<compile_context>
chip_gen: v6e
topology: v6e:2x2x1
jax: 0.10.0
libtpu: 0.0.40
codegen_flags: <defaults>
</compile_context>

<pallas_src>
import jax
import jax.numpy as jnp
import numpy as np
from jax import lax
from jax.experimental import pallas as pl
from jax.experimental.pallas import tpu as pltpu


def attn_net_kernel(x_ref, w1_ref, b1_ref, w2t_ref, b2_ref, a_ref):
    """One row-tile of the fused attention net.

    x_ref   : (TM, L)  f32  (cast to bf16 in-kernel for the MXU)
    w1_ref  : (L, D)   bf16
    b1_ref  : (1, D)   f32
    w2t_ref : (C, D)   bf16  (transposed second Linear weight)
    b2_ref  : (C, 1)   f32
    a_ref   : (C, TM)  f32   (lane-dense along the row axis)
    """
    # Linear 1: bf16 MXU matmul, f32 accumulation.
    x_b = x_ref[...].astype(jnp.bfloat16)
    z1 = jnp.dot(x_b, w1_ref[...], preferred_element_type=jnp.float32)
    # Bias + tanh in f32 (VPU/EUP; v5e has no bf16 EUP path).
    h = jnp.tanh(z1 + b1_ref[...])
    # Linear 2: (C, D) x (TM, D) contracting on D -> (C, TM). Keeps the store
    # lane-dense (128-wide rows) instead of a C(=1)-wide masked store.
    z2 = lax.dot_general(
        w2t_ref[...], h.astype(jnp.bfloat16),
        dimension_numbers=(((1,), (1,)), ((), ())),
        preferred_element_type=jnp.float32)
    a_ref[...] = z2 + b2_ref[...]


def prepare_attn_net_params(w1, b1, w2, b2):
    """One-time conversion of the Linear parameters into kernel layouts.

    w1 : (L, D), b1 : (D,)   -- first Linear (matmul layout)
    w2 : (D, C), b2 : (C,)   -- second Linear (C = n_classes)
    """
    L, D = w1.shape
    D2, C = w2.shape
    assert D2 == D
    return {
        "w1": w1.astype(jnp.bfloat16),                # (L, D)
        "b1": b1.reshape(1, D).astype(jnp.float32),   # (1, D)
        "w2t": w2.T.astype(jnp.bfloat16),             # (C, D)
        "b2": b2.reshape(C, 1).astype(jnp.float32),   # (C, 1)
    }


def attn_net_pallas(x, params, *, block_m=None):
    """Attn_Net forward. Returns (A, x) like the PyTorch module.

    x : (N, L) f32;  params from prepare_attn_net_params().
    """
    N, L = x.shape
    L2, D = params["w1"].shape
    C, D2 = params["w2t"].shape
    assert L2 == L and D2 == D

    if block_m is None:
        if N <= 128:
            block_m = N  # single full-extent block
        else:
            # >=2 grid steps (v7x megacore), capped at 512 rows (fills the
            # 256-wide MXU, amortizes per-step overhead, modest VMEM).
            block_m = max(128, min(512, pl.cdiv(pl.cdiv(N, 2), 128) * 128))
    n_blocks = pl.cdiv(N, block_m)

    a_t = pl.pallas_call(
        attn_net_kernel,
        out_shape=jax.ShapeDtypeStruct((C, N), jnp.float32),
        grid_spec=pltpu.PrefetchScalarGridSpec(
            num_scalar_prefetch=0,
            grid=(n_blocks,),
            in_specs=[
                pl.BlockSpec((block_m, L), lambda i: (i, 0)),  # x row tile
                pl.BlockSpec((L, D), lambda i: (0, 0)),        # w1 (resident)
                pl.BlockSpec((1, D), lambda i: (0, 0)),        # b1
                pl.BlockSpec((C, D), lambda i: (0, 0)),        # w2^T (resident)
                pl.BlockSpec((C, 1), lambda i: (0, 0)),        # b2
            ],
            out_specs=pl.BlockSpec((C, block_m), lambda i: (0, i)),
        ),
        compiler_params=pltpu.CompilerParams(
            dimension_semantics=("parallel",)),                # v7x: 2 TCs
    )(x, params["w1"], params["b1"], params["w2t"], params["b2"])

    # Tiny (C, N) -> (N, C) transpose in the wrapper; x passed through as-is.
    return a_t.T, x


if __name__ == "__main__":
    # Module defaults: L=1024, D=256, n_classes=1; small batch of instances.
    L, D, n_classes = 1024, 256, 1
    N = 256

    key = jax.random.PRNGKey(0)
    kx, k1, kb1, k2, kb2 = jax.random.split(key, 5)
    x = jax.random.normal(kx, (N, L), jnp.float32)
    w1 = jax.random.normal(k1, (L, D), jnp.float32) / jnp.sqrt(L)
    b1 = 0.1 * jax.random.normal(kb1, (D,), jnp.float32)
    w2 = jax.random.normal(k2, (D, n_classes), jnp.float32) / jnp.sqrt(D)
    b2 = 0.1 * jax.random.normal(kb2, (n_classes,), jnp.float32)

    # Weight preprocessing happens ONCE, outside the per-call hot path.
    params = prepare_attn_net_params(w1, b1, w2, b2)

    a, x_out = attn_net_pallas(x, params)
    a = jax.block_until_ready(a)
    assert a.shape == (N, n_classes)

    # Full-precision f32 reference of the module's forward.
    h_ref = jnp.tanh(jnp.dot(x, w1, precision=jax.lax.Precision.HIGHEST) + b1)
    a_ref = jnp.dot(h_ref, w2, precision=jax.lax.Precision.HIGHEST) + b2

    # Kernel uses bf16 MXU inputs with f32 accumulation -> bf16-level tolerance
    # (deliberate precision tradeoff; an f32 multi-pass path would be needed
    # for exact parity).
    np.testing.assert_allclose(np.asarray(a), np.asarray(a_ref),
                               rtol=5e-2, atol=5e-2)
    np.testing.assert_array_equal(np.asarray(x_out), np.asarray(x))
    print("KERNEL_OK")
</pallas_src>

<mosaic_0001>
module attributes {stable_mosaic.version = 11 : i64} {
  func.func @attn_net_kernel(%arg0: i32, %arg1: memref<128x1024xf32, #tpu.memory_space<vmem>>, %arg2: memref<1024x256xbf16, #tpu.memory_space<vmem>>, %arg3: memref<1x256xf32, #tpu.memory_space<vmem>>, %arg4: memref<1x256xbf16, #tpu.memory_space<vmem>>, %arg5: memref<1x1xf32, #tpu.memory_space<vmem>>, %arg6: memref<1x128xf32, #tpu.memory_space<vmem>>) attributes {dimension_semantics = [#tpu.dimension_semantics<parallel>], iteration_bounds = array<i64: 2>, scalar_prefetch = 0 : i64, scratch_operands = 0 : i64, tpu.core_type = #tpu.core_type<tc>, window_params = [{transform_indices = @transform_0, window_bounds = array<i64: 128, 1024>}, {pipeline_mode = #tpu.pipeline_mode<synchronous>, transform_indices = @transform_1, window_bounds = array<i64: 1024, 256>}, {pipeline_mode = #tpu.pipeline_mode<synchronous>, transform_indices = @transform_2, window_bounds = array<i64: 1, 256>}, {pipeline_mode = #tpu.pipeline_mode<synchronous>, transform_indices = @transform_3, window_bounds = array<i64: 1, 256>}, {pipeline_mode = #tpu.pipeline_mode<synchronous>, transform_indices = @transform_4, window_bounds = array<i64: 1, 1>}, {transform_indices = @transform_5, window_bounds = array<i64: 1, 128>}]} {
    %c0 = arith.constant 0 : index
    %c0_0 = arith.constant 0 : index
    %0 = vector.load %arg1[%c0, %c0_0] : memref<128x1024xf32, #tpu.memory_space<vmem>>, vector<128x1024xf32>
    %1 = arith.truncf %0 : vector<128x1024xf32> to vector<128x1024xbf16>
    %c0_1 = arith.constant 0 : index
    %c0_2 = arith.constant 0 : index
    %2 = vector.load %arg2[%c0_1, %c0_2] : memref<1024x256xbf16, #tpu.memory_space<vmem>>, vector<1024x256xbf16>
    %cst = arith.constant dense<0.000000e+00> : vector<128x256xf32>
    %3 = tpu.matmul %1, %2, %cst {dimension_numbers = #tpu.dot_dimension_numbers<[1], [0], [0], [1], [0, 0, 1, 1], [], []>} : vector<128x1024xbf16>, vector<1024x256xbf16>, vector<128x256xf32> -> vector<128x256xf32>
    %c0_3 = arith.constant 0 : index
    %c0_4 = arith.constant 0 : index
    %4 = vector.load %arg3[%c0_3, %c0_4] : memref<1x256xf32, #tpu.memory_space<vmem>>, vector<1x256xf32>
    %5 = vector.broadcast %4 : vector<1x256xf32> to vector<128x256xf32>
    %6 = arith.addf %3, %5 : vector<128x256xf32>
    %7 = math.tanh %6 : vector<128x256xf32>
    %c0_5 = arith.constant 0 : index
    %c0_6 = arith.constant 0 : index
    %8 = vector.load %arg4[%c0_5, %c0_6] : memref<1x256xbf16, #tpu.memory_space<vmem>>, vector<1x256xbf16>
    %9 = arith.truncf %7 : vector<128x256xf32> to vector<128x256xbf16>
    %cst_7 = arith.constant dense<0.000000e+00> : vector<1x128xf32>
    %10 = tpu.matmul %8, %9, %cst_7 {dimension_numbers = #tpu.dot_dimension_numbers<[1], [1], [0], [0], [0, 0, 1, 0], [], []>} : vector<1x256xbf16>, vector<128x256xbf16>, vector<1x128xf32> -> vector<1x128xf32>
    %c0_8 = arith.constant 0 : index
    %c0_9 = arith.constant 0 : index
    %11 = vector.load %arg5[%c0_8, %c0_9] : memref<1x1xf32, #tpu.memory_space<vmem>>, vector<1x1xf32>
    %12 = vector.broadcast %11 : vector<1x1xf32> to vector<1x128xf32>
    %13 = arith.addf %10, %12 : vector<1x128xf32>
    %c0_10 = arith.constant 0 : index
    %c0_11 = arith.constant 0 : index
    %14 = vector.load %arg6[%c0_10, %c0_11] : memref<1x128xf32, #tpu.memory_space<vmem>>, vector<1x128xf32>
    tpu.vector_store %arg6[%c0_10, %c0_11], %13 {strides = array<i32>} : memref<1x128xf32, #tpu.memory_space<vmem>>, vector<1x128xf32>,
    return
  }
  func.func @transform_0(%arg0: i32) -> (i32, i32) {
    %c0_i32 = arith.constant 0 : i32
    %c0_i32_0 = arith.constant 0 : i32
    return %arg0, %c0_i32 : i32, i32
  }
  func.func @transform_1(%arg0: i32) -> (i32, i32) {
    %c0_i32 = arith.constant 0 : i32
    %c0_i32_0 = arith.constant 0 : i32
    %c0_i32_1 = arith.constant 0 : i32
    return %c0_i32, %c0_i32_0 : i32, i32
  }
  func.func @transform_2(%arg0: i32) -> (i32, i32) {
    %c0_i32 = arith.constant 0 : i32
    %c0_i32_0 = arith.constant 0 : i32
    %c0_i32_1 = arith.constant 0 : i32
    return %c0_i32, %c0_i32_0 : i32, i32
  }
  func.func @transform_3(%arg0: i32) -> (i32, i32) {
    %c0_i32 = arith.constant 0 : i32
    %c0_i32_0 = arith.constant 0 : i32
    %c0_i32_1 = arith.constant 0 : i32
    return %c0_i32, %c0_i32_0 : i32, i32
  }
  func.func @transform_4(%arg0: i32) -> (i32, i32) {
    %c0_i32 = arith.constant 0 : i32
    %c0_i32_0 = arith.constant 0 : i32
    %c0_i32_1 = arith.constant 0 : i32
    return %c0_i32, %c0_i32_0 : i32, i32
  }
  func.func @transform_5(%arg0: i32) -> (i32, i32) {
    %c0_i32 = arith.constant 0 : i32
    %c0_i32_0 = arith.constant 0 : i32
    return %c0_i32, %arg0 : i32, i32
  }
}

</mosaic_0001>

<llo_original>
// kernel: tpu_custom_call.1
$region0: #{tpu_custom_call.1}
  #allocation0 [shape = 'u32[]', space=smem, size = 0x4, offset = 0x4, fixed_abs, tag = 'smem constant byte address 0x4 - core index']
  #allocation1 [shape = 'u32[144,128]{1,0:T(1,128)}', space=vmem, size = 0x12000, scoped, tag = 'internal scratch']
  #allocation2 [shape = 'f32[1,1]{1,0:T(1,128)S(1)}', space=vmem, size = 0x200, scoped, tag = 'scoped memory for tpu_custom_call.1']
  %s0 = inlined_call_operand.hbm [shape: f32[256,1024], index: 0, kind: input, shape index: {}]
  %s1 = inlined_call_operand.hbm [shape: bf16[1024,256], index: 1, kind: input, shape index: {}]
  %s2 = inlined_call_operand.vmem [shape: f32[1,256], index: 2, kind: input, shape index: {}]
  %s3 = inlined_call_operand.vmem [shape: bf16[1,256], index: 3, kind: input, shape index: {}]
  %s4 = inlined_call_operand.<no memory space> [shape: f32[1,1], index: 4, kind: input, shape index: {}]
  %s5 = inlined_call_operand.hbm [shape: f32[1,256], index: 5, kind: output, shape index: {}]
  %s6 = sld [smem:[#allocation0]]
  $region61: #{tpu_custom_call.1} parent=0
    _
  %s8 = ssub.s32 1, %s6
  %s9 = scalar_select 0, %s8, %s6
  %v10 = vstv %s4
  %11 = vst [vmem:[#allocation2] sm:$0x1] %v10
  $region1: #{tpu_custom_call.1} parent=0
    #allocation3 [shape = 'u8[1048576]{0}', space=vmem, size = 0x100000, scoped, tag = 'input window, operand 0']
    #allocation4 [shape = 's32[2]{0}', space=sflag, size = 0x8, scoped, tag = 'scoped memory for tpu_custom_call.1']
    #allocation5 [shape = 's32[2]{0}', space=sflag, size = 0x8, scoped, tag = 'scoped memory for tpu_custom_call.1']
    #allocation6 [shape = 'u8[524288]{0}', space=vmem, size = 0x80000, scoped, tag = 'input window, operand 1, single buffered']
    #allocation7 [shape = 's32[1]{0}', space=sflag, size = 0x4, scoped, tag = 'scoped memory for tpu_custom_call.1']
    #allocation8 [shape = 'u8[1024]{0}', space=vmem, size = 0x400, scoped, tag = 'output window, operand 0']
    %12 = vsyncpa [#allocation4], 0
    %s13 = scalar_lea.sflag [#allocation4], 1
    %14 = vsyncpa %s13, 0
    %15 = vsyncpa [#allocation7], 0
    %16 = vsyncpa [#allocation5], 0
    %s17 = scalar_lea.sflag [#allocation5], 1
    %18 = vsyncpa %s17, 0
    loop: start=0, step=1, limit=4
    $region2: #{tpu_custom_call.1} parent=1 // loop_pre_header
      _
    $region3: #{tpu_custom_call.1} parent=1 // loop_header
      %s20 = sphi 0, %s24
      %p21 = scmp.ge.s32.totalorder %s20, 4
      %s30 = sphi 0, %s32
      %s33 = sphi 0, %s30
      %s34 = sphi 0, %s33
      %s50 = sphi 0, %s34
      %s54 = sphi 0, %s54
      %s56 = sphi 0, %s54
      %s57 = sphi 0, %s56
      %s71 = sphi 0, %s57
      %s75 = sphi 0, %s75
      %s77 = sphi 0, %s75
      %s78 = sphi 0, %s77
      %s92 = sphi 0, %s78
      %s96 = sphi 0, %s96
      %s98 = sphi 0, %s96
      %s99 = sphi 0, %s98
      %s113 = sphi 0, %s99
      %s117 = sphi 0, %s117
      %s119 = sphi 0, %s117
      %s120 = sphi 0, %s119
      %s134 = sphi 0, %s120
      %s140 = sphi 0, %s142
      %s143 = sphi 0, %s140
      %s144 = sphi 0, %s143
      %s160 = sphi 0, %s144
    $region4: #{tpu_custom_call.1} parent=1 // loop_header_branch
      %23 = sbr.rel (%p21) target = $region8
    $region5: #{tpu_custom_call.1} parent=1 // loop_body
      %s25 = ssub.s32 %s20, 1
      %s26 = ssub.s32 %s20, 2
      %s27 = sadd.s32 %s20, 1
      %s28 = ssub.s32 %s20, %s27
      %p29 = scmp.eq.s32.totalorder %s28, 0
      %s31 = sadd.s32 %s30, 1
      %s32 = scalar_select %p29, %s30, %s31
      %p35 = pneg %p29
      %p36 = scmp.eq.s32.totalorder %s20, 1
      %p37 = por %p35, %p36
      %p38 = scmp.ne.s32.totalorder %s30, %s33
      %p39 = scmp.eq.s32.totalorder %s20, 0
      %p40 = por %p38, %p39
      %p41 = scmp.ne.s32.totalorder %s30, %s33
      %p42 = scmp.eq.s32.totalorder %s25, 1
      %p43 = por %p41, %p42
      %p44 = scmp.ne.s32.totalorder %s33, %s34
      %p45 = scmp.eq.s32.totalorder %s25, 0
      %p46 = por %p44, %p45
      %p47 = scmp.ne.s32.totalorder %s33, %s34
      %p48 = scmp.eq.s32.totalorder %s26, 1
      %p49 = por %p47, %p48
      %p51 = scmp.ne.s32.totalorder %s34, %s50
      %p52 = scmp.eq.s32.totalorder %s26, 0
      %p53 = por %p51, %p52
      %s55 = sadd.s32 %s54, 1
      %p58 = scmp.eq.s32.totalorder %s20, 1
      %p59 = scmp.ne.s32.totalorder %s54, %s56
      %p60 = scmp.eq.s32.totalorder %s20, 0
      %p61 = por %p59, %p60
      %p62 = scmp.ne.s32.totalorder %s54, %s56
      %p63 = scmp.eq.s32.totalorder %s25, 1
      %p64 = por %p62, %p63
      %p65 = scmp.ne.s32.totalorder %s56, %s57
      %p66 = scmp.eq.s32.totalorder %s25, 0
      %p67 = por %p65, %p66
      %p68 = scmp.ne.s32.totalorder %s56, %s57
      %p69 = scmp.eq.s32.totalorder %s26, 1
      %p70 = por %p68, %p69
      %p72 = scmp.ne.s32.totalorder %s57, %s71
      %p73 = scmp.eq.s32.totalorder %s26, 0
      %p74 = por %p72, %p73
      %s76 = sadd.s32 %s75, 1
      %p79 = scmp.eq.s32.totalorder %s20, 1
      %p80 = scmp.ne.s32.totalorder %s75, %s77
      %p81 = scmp.eq.s32.totalorder %s20, 0
      %p82 = por %p80, %p81
      %p83 = scmp.ne.s32.totalorder %s75, %s77
      %p84 = scmp.eq.s32.totalorder %s25, 1
      %p85 = por %p83, %p84
      %p86 = scmp.ne.s32.totalorder %s77, %s78
      %p87 = scmp.eq.s32.totalorder %s25, 0
      %p88 = por %p86, %p87
      %p89 = scmp.ne.s32.totalorder %s77, %s78
      %p90 = scmp.eq.s32.totalorder %s26, 1
      %p91 = por %p89, %p90
      %p93 = scmp.ne.s32.totalorder %s78, %s92
      %p94 = scmp.eq.s32.totalorder %s26, 0
      %p95 = por %p93, %p94
      %s97 = sadd.s32 %s96, 1
      %p100 = scmp.eq.s32.totalorder %s20, 1
      %p101 = scmp.ne.s32.totalorder %s96, %s98
      %p102 = scmp.eq.s32.totalorder %s20, 0
      %p103 = por %p101, %p102
      %p104 = scmp.ne.s32.totalorder %s96, %s98
      %p105 = scmp.eq.s32.totalorder %s25, 1
      %p106 = por %p104, %p105
      %p107 = scmp.ne.s32.totalorder %s98, %s99
      %p108 = scmp.eq.s32.totalorder %s25, 0
      %p109 = por %p107, %p108
      %p110 = scmp.ne.s32.totalorder %s98, %s99
      %p111 = scmp.eq.s32.totalorder %s26, 1
      %p112 = por %p110, %p111
      %p114 = scmp.ne.s32.totalorder %s99, %s113
      %p115 = scmp.eq.s32.totalorder %s26, 0
      %p116 = por %p114, %p115
      %s118 = sadd.s32 %s117, 1
      %p121 = scmp.eq.s32.totalorder %s20, 1
      %p122 = scmp.ne.s32.totalorder %s117, %s119
      %p123 = scmp.eq.s32.totalorder %s20, 0
      %p124 = por %p122, %p123
      %p125 = scmp.ne.s32.totalorder %s117, %s119
      %p126 = scmp.eq.s32.totalorder %s25, 1
      %p127 = por %p125, %p126
      %p128 = scmp.ne.s32.totalorder %s119, %s120
      %p129 = scmp.eq.s32.totalorder %s25, 0
      %p130 = por %p128, %p129
      %p131 = scmp.ne.s32.totalorder %s119, %s120
      %p132 = scmp.eq.s32.totalorder %s26, 1
      %p133 = por %p131, %p132
      %p135 = scmp.ne.s32.totalorder %s120, %s134
      %p136 = scmp.eq.s32.totalorder %s26, 0
      %p137 = por %p135, %p136
      %s138 = ssub.s32 %s20, %s27
      %p139 = scmp.eq.s32.totalorder %s138, 0
      %s141 = sadd.s32 %s140, 1
      %s142 = scalar_select %p139, %s140, %s141
      %p145 = pneg %p139
      %p146 = scmp.eq.s32.totalorder %s20, 1
      %p147 = por %p145, %p146
      %p148 = scmp.ne.s32.totalorder %s140, %s143
      %p149 = scmp.eq.s32.totalorder %s20, 0
      %p150 = por %p148, %p149
      %p151 = scmp.ne.s32.totalorder %s140, %s143
      %p152 = scmp.eq.s32.totalorder %s25, 1
      %p153 = por %p151, %p152
      %p154 = scmp.ne.s32.totalorder %s143, %s144
      %p155 = scmp.eq.s32.totalorder %s25, 0
      %p156 = por %p154, %p155
      %p157 = scmp.ne.s32.totalorder %s143, %s144
      %p158 = scmp.eq.s32.totalorder %s26, 1
      %p159 = por %p157, %p158
      %p161 = scmp.ne.s32.totalorder %s144, %s160
      %p162 = scmp.eq.s32.totalorder %s26, 0
      %p163 = por %p161, %p162
      %p164 = scmp.le.s32.totalorder 1, %s20
      %p165 = scmp.lt.s32.totalorder %s20, 3
      %p166 = pnand %p164, %p165
      %p167 = pneg %p166
      // Predicated region
      $region9: #{tpu_custom_call.1} parent=5 // pred_check
        _
      $region10: #{tpu_custom_call.1} parent=5 // pred_check_branch
        %169 = sbr.rel (%p166) target = $region12
      $region11: #{tpu_custom_call.1} parent=5 // pred_region
        %s170 = ssub.s32 %s20, 1
        // Predicated region
        $region13: #{tpu_custom_call.1} parent=11 // pred_check
          %p171 = pneg %p67
        $region14: #{tpu_custom_call.1} parent=11 // pred_check_branch
          %173 = sbr.rel (%p171) target = $region16
        $region15: #{tpu_custom_call.1} parent=11 // pred_region
          %s175 = ssub.s32 16384, 16384
          %176 = vsyncadd [#allocation7], %s175
          %s177 = sshll.u32 [#allocation6], 4
          %s178 = int_to_ptr.vmem [resolvable:$true] %s177
          %183 = dma.hbm_to_vmem [thread:$0]  %s1, 16384, %s178, [#allocation7], 128, 128, 8
        $region16: #{tpu_custom_call.1} parent=11 // pred_fallthru
          _
        // Predicated region
        $region17: #{tpu_custom_call.1} parent=11 // pred_check
          %p184 = pneg %p88
        $region18: #{tpu_custom_call.1} parent=11 // pred_check_branch
          %186 = sbr.rel (%p184) target = $region20
        $region19: #{tpu_custom_call.1} parent=11 // pred_region
          _
        $region20: #{tpu_custom_call.1} parent=11 // pred_fallthru
          _
        // Predicated region
        $region21: #{tpu_custom_call.1} parent=11 // pred_check
          %p187 = pneg %p109
        $region22: #{tpu_custom_call.1} parent=11 // pred_check_branch
          %189 = sbr.rel (%p187) target = $region24
        $region23: #{tpu_custom_call.1} parent=11 // pred_region
          _
        $region24: #{tpu_custom_call.1} parent=11 // pred_fallthru
          _
        // Predicated region
        $region25: #{tpu_custom_call.1} parent=11 // pred_check
          %p190 = pneg %p130
        $region26: #{tpu_custom_call.1} parent=11 // pred_check_branch
          %192 = sbr.rel (%p190) target = $region28
        $region27: #{tpu_custom_call.1} parent=11 // pred_region
          _
        $region28: #{tpu_custom_call.1} parent=11 // pred_fallthru
          _
      $region12: #{tpu_custom_call.1} parent=5 // pred_fallthru
        _
      %p193 = scmp.lt.s32.totalorder %s20, 2
      // Predicated region
      $region29: #{tpu_custom_call.1} parent=5 // pred_check
        %p194 = pneg %p193
      $region30: #{tpu_custom_call.1} parent=5 // pred_check_branch
        %196 = sbr.rel (%p194) target = $region32
      $region31: #{tpu_custom_call.1} parent=5 // pred_region
        // Predicated region
        $region33: #{tpu_custom_call.1} parent=31 // pred_check
          %p197 = pneg %p40
        $region34: #{tpu_custom_call.1} parent=31 // pred_check_branch
          %199 = sbr.rel (%p197) target = $region36
        $region35: #{tpu_custom_call.1} parent=31 // pred_region
          %s200 = sand.u32 %s30, 1
          %s201 = scalar_lea.sflag [#allocation4], %s200
          %s202 = sand.u32 %s30, 1
          %s203 = smul.addr %s202, 1024
          %s204 = scalar_lea.vmem [#allocation3], %s203
          %s205 = smul.u32 16, %s20
          %s207 = ssub.s32 16384, 16384
          %208 = vsyncadd %s201, %s207
          %s209 = smul.addr %s205, 8
          %s210 = smul.addr %s209, 128
          %s211 = scalar_lea.hbm %s0, %s210
          %s212 = sshll.u32 %s204, 4
          %s213 = int_to_ptr.vmem [resolvable:$true] %s212
          %218 = dma.hbm_to_vmem [thread:$0]  %s211, 16384, %s213, %s201, 1024, 1024, 64
        $region36: #{tpu_custom_call.1} parent=31 // pred_fallthru
          _
      $region32: #{tpu_custom_call.1} parent=5 // pred_fallthru
        _
      %p219 = scmp.le.s32.totalorder 1, %s20
      %p220 = scmp.lt.s32.totalorder %s20, 3
      %p221 = pnand %p219, %p220
      %p222 = pneg %p221
      // Predicated region
      $region37: #{tpu_custom_call.1} parent=5 // pred_check
        _
      $region38: #{tpu_custom_call.1} parent=5 // pred_check_branch
        %224 = sbr.rel (%p221) target = $region40
      $region39: #{tpu_custom_call.1} parent=5 // pred_region
        %s225 = ssub.s32 %s20, 1
        %s226 = sand.u32 %s33, 1
        %s227 = scalar_lea.sflag [#allocation4], %s226
        %s228 = sand.u32 %s33, 1
        %s229 = smul.addr %s228, 1024
        %s230 = scalar_lea.vmem [#allocation3], %s229
        // Predicated region
        $region41: #{tpu_custom_call.1} parent=39 // pred_check
          %p231 = pneg %p46
        $region42: #{tpu_custom_call.1} parent=39 // pred_check_branch
          %233 = sbr.rel (%p231) target = $region44
        $region43: #{tpu_custom_call.1} parent=39 // pred_region
          %234 = dma.done %s227, 16384
        $region44: #{tpu_custom_call.1} parent=39 // pred_fallthru
          _
        // Predicated region
        $region45: #{tpu_custom_call.1} parent=39 // pred_check
          %p235 = pneg %p67
        $region46: #{tpu_custom_call.1} parent=39 // pred_check_branch
          %237 = sbr.rel (%p235) target = $region48
        $region47: #{tpu_custom_call.1} parent=39 // pred_region
          %238 = dma.done [#allocation7], 16384
        $region48: #{tpu_custom_call.1} parent=39 // pred_fallthru
          _
        %s239 = sand.u32 %s33, 1
        %s240 = scalar_lea.sflag [#allocation4], %s239
        %s241 = sand.u32 %s33, 1
        %s242 = smul.addr %s241, 1024
        %s243 = scalar_lea.vmem [#allocation3], %s242
        %p244 = pneg %p46
        %p245 = pneg %p43
        %p246 = pneg %p67
        %p247 = pneg %p64
        %p248 = pneg %p88
        %p249 = pneg %p85
        %p250 = pneg %p109
        %p251 = pneg %p106
        %p252 = pneg %p130
        %p253 = pneg %p127
        %p254 = pneg %p156
        %p255 = pneg %p153
        %s256 = sand.u32 %s143, 1
        %s257 = scalar_lea.sflag [#allocation5], %s256
        %s258 = sand.u32 %s143, 1
        %s259 = scalar_lea.vmem [#allocation8], %s258
        %s260 = smul.u32 16, %s25
        %v262 = vld [vmem:[%s230] sm:$0xff]
        %v263 = vld [vmem:[%s230 + $0x8] sm:$0xff]
        %v264 = vld [vmem:[%s230 + $0x10] sm:$0xff]
        %v265 = vld [vmem:[%s230 + $0x18] sm:$0xff]
        %v266 = vld [vmem:[%s230 + $0x20] sm:$0xff]
        %v267 = vld [vmem:[%s230 + $0x28] sm:$0xff]
        %v268 = vld [vmem:[%s230 + $0x30] sm:$0xff]
        %v269 = vld [vmem:[%s230 + $0x38] sm:$0xff]
        %v270 = vld [vmem:[%s230 + $0x40] sm:$0xff]
        %v271 = vld [vmem:[%s230 + $0x48] sm:$0xff]
        %v272 = vld [vmem:[%s230 + $0x50] sm:$0xff]
        %v273 = vld [vmem:[%s230 + $0x58] sm:$0xff]
        %v274 = vld [vmem:[%s230 + $0x60] sm:$0xff]
        %v275 = vld [vmem:[%s230 + $0x68] sm:$0xff]
        %v276 = vld [vmem:[%s230 + $0x70] sm:$0xff]
        %v277 = vld [vmem:[%s230 + $0x78] sm:$0xff]
        %v278 = vld [vmem:[%s230 + $0x80] sm:$0xff]
        %v279 = vld [vmem:[%s230 + $0x88] sm:$0xff]
        %v280 = vld [vmem:[%s230 + $0x90] sm:$0xff]
        %v281 = vld [vmem:[%s230 + $0x98] sm:$0xff]
        %v282 = vld [vmem:[%s230 + $0xa0] sm:$0xff]
        %v283 = vld [vmem:[%s230 + $0xa8] sm:$0xff]
        %v284 = vld [vmem:[%s230 + $0xb0] sm:$0xff]
        %v285 = vld [vmem:[%s230 + $0xb8] sm:$0xff]
        %v286 = vld [vmem:[%s230 + $0xc0] sm:$0xff]
        %v287 = vld [vmem:[%s230 + $0xc8] sm:$0xff]
        %v288 = vld [vmem:[%s230 + $0xd0] sm:$0xff]
        %v289 = vld [vmem:[%s230 + $0xd8] sm:$0xff]
        %v290 = vld [vmem:[%s230 + $0xe0] sm:$0xff]
        %v291 = vld [vmem:[%s230 + $0xe8] sm:$0xff]
        %v292 = vld [vmem:[%s230 + $0xf0] sm:$0xff]
        %v293 = vld [vmem:[%s230 + $0xf8] sm:$0xff]
        %v294 = vld [vmem:[%s230 + $0x100] sm:$0xff]
        %v295 = vld [vmem:[%s230 + $0x108] sm:$0xff]
        %v296 = vld [vmem:[%s230 + $0x110] sm:$0xff]
        %v297 = vld [vmem:[%s230 + $0x118] sm:$0xff]
        %v298 = vld [vmem:[%s230 + $0x120] sm:$0xff]
        %v299 = vld [vmem:[%s230 + $0x128] sm:$0xff]
        %v300 = vld [vmem:[%s230 + $0x130] sm:$0xff]
        %v301 = vld [vmem:[%s230 + $0x138] sm:$0xff]
        %v302 = vld [vmem:[%s230 + $0x140] sm:$0xff]
        %v303 = vld [vmem:[%s230 + $0x148] sm:$0xff]
        %v304 = vld [vmem:[%s230 + $0x150] sm:$0xff]
        %v305 = vld [vmem:[%s230 + $0x158] sm:$0xff]
        %v306 = vld [vmem:[%s230 + $0x160] sm:$0xff]
        %v307 = vld [vmem:[%s230 + $0x168] sm:$0xff]
        %v308 = vld [vmem:[%s230 + $0x170] sm:$0xff]
        %v309 = vld [vmem:[%s230 + $0x178] sm:$0xff]
        %v310 = vld [vmem:[%s230 + $0x180] sm:$0xff]
        %v311 = vld [vmem:[%s230 + $0x188] sm:$0xff]
        %v312 = vld [vmem:[%s230 + $0x190] sm:$0xff]
        %v313 = vld [vmem:[%s230 + $0x198] sm:$0xff]
        %v314 = vld [vmem:[%s230 + $0x1a0] sm:$0xff]
        %v315 = vld [vmem:[%s230 + $0x1a8] sm:$0xff]
        %v316 = vld [vmem:[%s230 + $0x1b0] sm:$0xff]
        %v317 = vld [vmem:[%s230 + $0x1b8] sm:$0xff]
        %v318 = vld [vmem:[%s230 + $0x1c0] sm:$0xff]
        %v319 = vld [vmem:[%s230 + $0x1c8] sm:$0xff]
        %v320 = vld [vmem:[%s230 + $0x1d0] sm:$0xff]
        %v321 = vld [vmem:[%s230 + $0x1d8] sm:$0xff]
        %v322 = vld [vmem:[%s230 + $0x1e0] sm:$0xff]
        %v323 = vld [vmem:[%s230 + $0x1e8] sm:$0xff]
        %v324 = vld [vmem:[%s230 + $0x1f0] sm:$0xff]
        %v325 = vld [vmem:[%s230 + $0x1f8] sm:$0xff]
        %v326 = vld [vmem:[%s230 + $0x200] sm:$0xff]
        %v327 = vld [vmem:[%s230 + $0x208] sm:$0xff]
        %v328 = vld [vmem:[%s230 + $0x210] sm:$0xff]
        %v329 = vld [vmem:[%s230 + $0x218] sm:$0xff]
        %v330 = vld [vmem:[%s230 + $0x220] sm:$0xff]
        %v331 = vld [vmem:[%s230 + $0x228] sm:$0xff]
        %v332 = vld [vmem:[%s230 + $0x230] sm:$0xff]
        %v333 = vld [vmem:[%s230 + $0x238] sm:$0xff]
        %v334 = vld [vmem:[%s230 + $0x240] sm:$0xff]
        %v335 = vld [vmem:[%s230 + $0x248] sm:$0xff]
        %v336 = vld [vmem:[%s230 + $0x250] sm:$0xff]
        %v337 = vld [vmem:[%s230 + $0x258] sm:$0xff]
        %v338 = vld [vmem:[%s230 + $0x260] sm:$0xff]
        %v339 = vld [vmem:[%s230 + $0x268] sm:$0xff]
        %v340 = vld [vmem:[%s230 + $0x270] sm:$0xff]
        %v341 = vld [vmem:[%s230 + $0x278] sm:$0xff]
        %v342 = vld [vmem:[%s230 + $0x280] sm:$0xff]
        %v343 = vld [vmem:[%s230 + $0x288] sm:$0xff]
        %v344 = vld [vmem:[%s230 + $0x290] sm:$0xff]
        %v345 = vld [vmem:[%s230 + $0x298] sm:$0xff]
        %v346 = vld [vmem:[%s230 + $0x2a0] sm:$0xff]
        %v347 = vld [vmem:[%s230 + $0x2a8] sm:$0xff]
        %v348 = vld [vmem:[%s230 + $0x2b0] sm:$0xff]
        %v349 = vld [vmem:[%s230 + $0x2b8] sm:$0xff]
        %v350 = vld [vmem:[%s230 + $0x2c0] sm:$0xff]
        %v351 = vld [vmem:[%s230 + $0x2c8] sm:$0xff]
        %v352 = vld [vmem:[%s230 + $0x2d0] sm:$0xff]
        %v353 = vld [vmem:[%s230 + $0x2d8] sm:$0xff]
        %v354 = vld [vmem:[%s230 + $0x2e0] sm:$0xff]
        %v355 = vld [vmem:[%s230 + $0x2e8] sm:$0xff]
        %v356 = vld [vmem:[%s230 + $0x2f0] sm:$0xff]
        %v357 = vld [vmem:[%s230 + $0x2f8] sm:$0xff]
        %v358 = vld [vmem:[%s230 + $0x300] sm:$0xff]
        %v359 = vld [vmem:[%s230 + $0x308] sm:$0xff]
        %v360 = vld [vmem:[%s230 + $0x310] sm:$0xff]
        %v361 = vld [vmem:[%s230 + $0x318] sm:$0xff]
        %v362 = vld [vmem:[%s230 + $0x320] sm:$0xff]
        %v363 = vld [vmem:[%s230 + $0x328] sm:$0xff]
        %v364 = vld [vmem:[%s230 + $0x330] sm:$0xff]
        %v365 = vld [vmem:[%s230 + $0x338] sm:$0xff]
        %v366 = vld [vmem:[%s230 + $0x340] sm:$0xff]
        %v367 = vld [vmem:[%s230 + $0x348] sm:$0xff]
        %v368 = vld [vmem:[%s230 + $0x350] sm:$0xff]
        %v369 = vld [vmem:[%s230 + $0x358] sm:$0xff]
        %v370 = vld [vmem:[%s230 + $0x360] sm:$0xff]
        %v371 = vld [vmem:[%s230 + $0x368] sm:$0xff]
        %v372 = vld [vmem:[%s230 + $0x370] sm:$0xff]
        %v373 = vld [vmem:[%s230 + $0x378] sm:$0xff]
        %v374 = vld [vmem:[%s230 + $0x380] sm:$0xff]
        %v375 = vld [vmem:[%s230 + $0x388] sm:$0xff]
        %v376 = vld [vmem:[%s230 + $0x390] sm:$0xff]
        %v377 = vld [vmem:[%s230 + $0x398] sm:$0xff]
        %v378 = vld [vmem:[%s230 + $0x3a0] sm:$0xff]
        %v379 = vld [vmem:[%s230 + $0x3a8] sm:$0xff]
        %v380 = vld [vmem:[%s230 + $0x3b0] sm:$0xff]
        %v381 = vld [vmem:[%s230 + $0x3b8] sm:$0xff]
        %v382 = vld [vmem:[%s230 + $0x3c0] sm:$0xff]
        %v383 = vld [vmem:[%s230 + $0x3c8] sm:$0xff]
        %v384 = vld [vmem:[%s230 + $0x3d0] sm:$0xff]
        %v385 = vld [vmem:[%s230 + $0x3d8] sm:$0xff]
        %v386 = vld [vmem:[%s230 + $0x3e0] sm:$0xff]
        %v387 = vld [vmem:[%s230 + $0x3e8] sm:$0xff]
        %v388 = vld [vmem:[%s230 + $0x3f0] sm:$0xff]
        %v389 = vld [vmem:[%s230 + $0x3f8] sm:$0xff]
        %v390 = vpack.c.bf16 %v270, %v262
        %v391 = vpack.c.bf16 %v271, %v263
        %v392 = vpack.c.bf16 %v272, %v264
        %v393 = vpack.c.bf16 %v273, %v265
        %v394 = vpack.c.bf16 %v274, %v266
        %v395 = vpack.c.bf16 %v275, %v267
        %v396 = vpack.c.bf16 %v276, %v268
        %v397 = vpack.c.bf16 %v277, %v269
        %v398 = vpack.c.bf16 %v286, %v278
        %v399 = vpack.c.bf16 %v287, %v279
        %v400 = vpack.c.bf16 %v288, %v280
        %v401 = vpack.c.bf16 %v289, %v281
        %v402 = vpack.c.bf16 %v290, %v282
        %v403 = vpack.c.bf16 %v291, %v283
        %v404 = vpack.c.bf16 %v292, %v284
        %v405 = vpack.c.bf16 %v293, %v285
        %v406 = vpack.c.bf16 %v302, %v294
        %v407 = vpack.c.bf16 %v303, %v295
        %v408 = vpack.c.bf16 %v304, %v296
        %v409 = vpack.c.bf16 %v305, %v297
        %v410 = vpack.c.bf16 %v306, %v298
        %v411 = vpack.c.bf16 %v307, %v299
        %v412 = vpack.c.bf16 %v308, %v300
        %v413 = vpack.c.bf16 %v309, %v301
        %v414 = vpack.c.bf16 %v318, %v310
        %v415 = vpack.c.bf16 %v319, %v311
        %v416 = vpack.c.bf16 %v320, %v312
        %v417 = vpack.c.bf16 %v321, %v313
        %v418 = vpack.c.bf16 %v322, %v314
        %v419 = vpack.c.bf16 %v323, %v315
        %v420 = vpack.c.bf16 %v324, %v316
        %v421 = vpack.c.bf16 %v325, %v317
        %v422 = vpack.c.bf16 %v334, %v326
        %v423 = vpack.c.bf16 %v335, %v327
        %v424 = vpack.c.bf16 %v336, %v328
        %v425 = vpack.c.bf16 %v337, %v329
        %v426 = vpack.c.bf16 %v338, %v330
        %v427 = vpack.c.bf16 %v339, %v331
        %v428 = vpack.c.bf16 %v340, %v332
        %v429 = vpack.c.bf16 %v341, %v333
        %v430 = vpack.c.bf16 %v350, %v342
        %v431 = vpack.c.bf16 %v351, %v343
        %v432 = vpack.c.bf16 %v352, %v344
        %v433 = vpack.c.bf16 %v353, %v345
        %v434 = vpack.c.bf16 %v354, %v346
        %v435 = vpack.c.bf16 %v355, %v347
        %v436 = vpack.c.bf16 %v356, %v348
        %v437 = vpack.c.bf16 %v357, %v349
        %v438 = vpack.c.bf16 %v366, %v358
        %v439 = vpack.c.bf16 %v367, %v359
        %v440 = vpack.c.bf16 %v368, %v360
        %v441 = vpack.c.bf16 %v369, %v361
        %v442 = vpack.c.bf16 %v370, %v362
        %v443 = vpack.c.bf16 %v371, %v363
        %v444 = vpack.c.bf16 %v372, %v364
        %v445 = vpack.c.bf16 %v373, %v365
        %v446 = vpack.c.bf16 %v382, %v374
        %v447 = vpack.c.bf16 %v383, %v375
        %v448 = vpack.c.bf16 %v384, %v376
        %v449 = vpack.c.bf16 %v385, %v377
        %v450 = vpack.c.bf16 %v386, %v378
        %v451 = vpack.c.bf16 %v387, %v379
        %v452 = vpack.c.bf16 %v388, %v380
        %v453 = vpack.c.bf16 %v389, %v381
        %v454 = vld [vmem:[#allocation6] sm:$0xff]
        %v455 = vld [vmem:[#allocation6 + $0x8] sm:$0xff]
        %v456 = vld [vmem:[#allocation6 + $0x10] sm:$0xff]
        %v457 = vld [vmem:[#allocation6 + $0x18] sm:$0xff]
        %v458 = vld [vmem:[#allocation6 + $0x20] sm:$0xff]
        %v459 = vld [vmem:[#allocation6 + $0x28] sm:$0xff]
        %v460 = vld [vmem:[#allocation6 + $0x30] sm:$0xff]
        %v461 = vld [vmem:[#allocation6 + $0x38] sm:$0xff]
        %v462 = vld [vmem:[#allocation6 + $0x40] sm:$0xff]
        %v463 = vld [vmem:[#allocation6 + $0x48] sm:$0xff]
        %v464 = vld [vmem:[#allocation6 + $0x50] sm:$0xff]
        %v465 = vld [vmem:[#allocation6 + $0x58] sm:$0xff]
        %v466 = vld [vmem:[#allocation6 + $0x60] sm:$0xff]
        %v467 = vld [vmem:[#allocation6 + $0x68] sm:$0xff]
        %v468 = vld [vmem:[#allocation6 + $0x70] sm:$0xff]
        %v469 = vld [vmem:[#allocation6 + $0x78] sm:$0xff]
        %v470 = vld [vmem:[#allocation6 + $0x80] sm:$0xff]
        %v471 = vld [vmem:[#allocation6 + $0x88] sm:$0xff]
        %v472 = vld [vmem:[#allocation6 + $0x90] sm:$0xff]
        %v473 = vld [vmem:[#allocation6 + $0x98] sm:$0xff]
        %v474 = vld [vmem:[#allocation6 + $0xa0] sm:$0xff]
        %v475 = vld [vmem:[#allocation6 + $0xa8] sm:$0xff]
        %v476 = vld [vmem:[#allocation6 + $0xb0] sm:$0xff]
        %v477 = vld [vmem:[#allocation6 + $0xb8] sm:$0xff]
        %v478 = vld [vmem:[#allocation6 + $0xc0] sm:$0xff]
        %v479 = vld [vmem:[#allocation6 + $0xc8] sm:$0xff]
        %v480 = vld [vmem:[#allocation6 + $0xd0] sm:$0xff]
        %v481 = vld [vmem:[#allocation6 + $0xd8] sm:$0xff]
        %v482 = vld [vmem:[#allocation6 + $0xe0] sm:$0xff]
        %v483 = vld [vmem:[#allocation6 + $0xe8] sm:$0xff]
        %v484 = vld [vmem:[#allocation6 + $0xf0] sm:$0xff]
        %v485 = vld [vmem:[#allocation6 + $0xf8] sm:$0xff]
        %v486 = vld [vmem:[#allocation6 + $0x100] sm:$0xff]
        %v487 = vld [vmem:[#allocation6 + $0x108] sm:$0xff]
        %v488 = vld [vmem:[#allocation6 + $0x110] sm:$0xff]
        %v489 = vld [vmem:[#allocation6 + $0x118] sm:$0xff]
        %v490 = vld [vmem:[#allocation6 + $0x120] sm:$0xff]
        %v491 = vld [vmem:[#allocation6 + $0x128] sm:$0xff]
        %v492 = vld [vmem:[#allocation6 + $0x130] sm:$0xff]
        %v493 = vld [vmem:[#allocation6 + $0x138] sm:$0xff]
        %v494 = vld [vmem:[#allocation6 + $0x140] sm:$0xff]
        %v495 = vld [vmem:[#allocation6 + $0x148] sm:$0xff]
        %v496 = vld [vmem:[#allocation6 + $0x150] sm:$0xff]
        %v497 = vld [vmem:[#allocation6 + $0x158] sm:$0xff]
        %v498 = vld [vmem:[#allocation6 + $0x160] sm:$0xff]
        %v499 = vld [vmem:[#allocation6 + $0x168] sm:$0xff]
        %v500 = vld [vmem:[#allocation6 + $0x170] sm:$0xff]
        %v501 = vld [vmem:[#allocation6 + $0x178] sm:$0xff]
        %v502 = vld [vmem:[#allocation6 + $0x180] sm:$0xff]
        %v503 = vld [vmem:[#allocation6 + $0x188] sm:$0xff]
        %v504 = vld [vmem:[#allocation6 + $0x190] sm:$0xff]
        %v505 = vld [vmem:[#allocation6 + $0x198] sm:$0xff]
        %v506 = vld [vmem:[#allocation6 + $0x1a0] sm:$0xff]
        %v507 = vld [vmem:[#allocation6 + $0x1a8] sm:$0xff]
        %v508 = vld [vmem:[#allocation6 + $0x1b0] sm:$0xff]
        %v509 = vld [vmem:[#allocation6 + $0x1b8] sm:$0xff]
        %v510 = vld [vmem:[#allocation6 + $0x1c0] sm:$0xff]
        %v511 = vld [vmem:[#allocation6 + $0x1c8] sm:$0xff]
        %v512 = vld [vmem:[#allocation6 + $0x1d0] sm:$0xff]
        %v513 = vld [vmem:[#allocation6 + $0x1d8] sm:$0xff]
        %v514 = vld [vmem:[#allocation6 + $0x1e0] sm:$0xff]
        %v515 = vld [vmem:[#allocation6 + $0x1e8] sm:$0xff]
        %v516 = vld [vmem:[#allocation6 + $0x1f0] sm:$0xff]
        %v517 = vld [vmem:[#allocation6 + $0x1f8] sm:$0xff]
        %v518 = vld [vmem:[#allocation6 + $0x200] sm:$0xff]
        %v519 = vld [vmem:[#allocation6 + $0x208] sm:$0xff]
        %v520 = vld [vmem:[#allocation6 + $0x210] sm:$0xff]
        %v521 = vld [vmem:[#allocation6 + $0x218] sm:$0xff]
        %v522 = vld [vmem:[#allocation6 + $0x220] sm:$0xff]
        %v523 = vld [vmem:[#allocation6 + $0x228] sm:$0xff]
        %v524 = vld [vmem:[#allocation6 + $0x230] sm:$0xff]
        %v525 = vld [vmem:[#allocation6 + $0x238] sm:$0xff]
        %v526 = vld [vmem:[#allocation6 + $0x240] sm:$0xff]
        %v527 = vld [vmem:[#allocation6 + $0x248] sm:$0xff]
        %v528 = vld [vmem:[#allocation6 + $0x250] sm:$0xff]
        %v529 = vld [vmem:[#allocation6 + $0x258] sm:$0xff]
        %v530 = vld [vmem:[#allocation6 + $0x260] sm:$0xff]
        %v531 = vld [vmem:[#allocation6 + $0x268] sm:$0xff]
        %v532 = vld [vmem:[#allocation6 + $0x270] sm:$0xff]
        %v533 = vld [vmem:[#allocation6 + $0x278] sm:$0xff]
        %v534 = vld [vmem:[#allocation6 + $0x280] sm:$0xff]
        %v535 = vld [vmem:[#allocation6 + $0x288] sm:$0xff]
        %v536 = vld [vmem:[#allocation6 + $0x290] sm:$0xff]
        %v537 = vld [vmem:[#allocation6 + $0x298] sm:$0xff]
        %v538 = vld [vmem:[#allocation6 + $0x2a0] sm:$0xff]
        %v539 = vld [vmem:[#allocation6 + $0x2a8] sm:$0xff]
        %v540 = vld [vmem:[#allocation6 + $0x2b0] sm:$0xff]
        %v541 = vld [vmem:[#allocation6 + $0x2b8] sm:$0xff]
        %v542 = vld [vmem:[#allocation6 + $0x2c0] sm:$0xff]
        %v543 = vld [vmem:[#allocation6 + $0x2c8] sm:$0xff]
        %v544 = vld [vmem:[#allocation6 + $0x2d0] sm:$0xff]
        %v545 = vld [vmem:[#allocation6 + $0x2d8] sm:$0xff]
        %v546 = vld [vmem:[#allocation6 + $0x2e0] sm:$0xff]
        %v547 = vld [vmem:[#allocation6 + $0x2e8] sm:$0xff]
        %v548 = vld [vmem:[#allocation6 + $0x2f0] sm:$0xff]
        %v549 = vld [vmem:[#allocation6 + $0x2f8] sm:$0xff]
        %v550 = vld [vmem:[#allocation6 + $0x300] sm:$0xff]
        %v551 = vld [vmem:[#allocation6 + $0x308] sm:$0xff]
        %v552 = vld [vmem:[#allocation6 + $0x310] sm:$0xff]
        %v553 = vld [vmem:[#allocation6 + $0x318] sm:$0xff]
        %v554 = vld [vmem:[#allocation6 + $0x320] sm:$0xff]
        %v555 = vld [vmem:[#allocation6 + $0x328] sm:$0xff]
        %v556 = vld [vmem:[#allocation6 + $0x330] sm:$0xff]
        %v557 = vld [vmem:[#allocation6 + $0x338] sm:$0xff]
        %v558 = vld [vmem:[#allocation6 + $0x340] sm:$0xff]
        %v559 = vld [vmem:[#allocation6 + $0x348] sm:$0xff]
        %v560 = vld [vmem:[#allocation6 + $0x350] sm:$0xff]
        %v561 = vld [vmem:[#allocation6 + $0x358] sm:$0xff]
        %v562 = vld [vmem:[#allocation6 + $0x360] sm:$0xff]
        %v563 = vld [vmem:[#allocation6 + $0x368] sm:$0xff]
        %v564 = vld [vmem:[#allocation6 + $0x370] sm:$0xff]
        %v565 = vld [vmem:[#allocation6 + $0x378] sm:$0xff]
        %v566 = vld [vmem:[#allocation6 + $0x380] sm:$0xff]
        %v567 = vld [vmem:[#allocation6 + $0x388] sm:$0xff]
        %v568 = vld [vmem:[#allocation6 + $0x390] sm:$0xff]
        %v569 = vld [vmem:[#allocation6 + $0x398] sm:$0xff]
        %v570 = vld [vmem:[#allocation6 + $0x3a0] sm:$0xff]
        %v571 = vld [vmem:[#allocation6 + $0x3a8] sm:$0xff]
        %v572 = vld [vmem:[#allocation6 + $0x3b0] sm:$0xff]
        %v573 = vld [vmem:[#allocation6 + $0x3b8] sm:$0xff]
        %v574 = vld [vmem:[#allocation6 + $0x3c0] sm:$0xff]
        %v575 = vld [vmem:[#allocation6 + $0x3c8] sm:$0xff]
        %v576 = vld [vmem:[#allocation6 + $0x3d0] sm:$0xff]
        %v577 = vld [vmem:[#allocation6 + $0x3d8] sm:$0xff]
        %v578 = vld [vmem:[#allocation6 + $0x3e0] sm:$0xff]
        %v579 = vld [vmem:[#allocation6 + $0x3e8] sm:$0xff]
        %v580 = vld [vmem:[#allocation6 + $0x3f0] sm:$0xff]
        %v581 = vld [vmem:[#allocation6 + $0x3f8] sm:$0xff]
        %v582 = vld [vmem:[%s2] sm:$0x3]
        %v584 = vlaneseq
        %v585 = vshrl.u32 %v584, 7
        %v586 = vsub.s32 0, %v585
        %v587 = vrot.slane %v582, %v586
        %v588 = vlaneseq
        %v589 = vshrl.u32 %v588, 7
        %v590 = vsub.s32 1, %v589
        %v591 = vrot.slane %v582, %v590
        %v722 = vunpack.c.l.b16 %v454
        %v723 = vunpack.c.h.b16 %v454
        %v724 = vunpack.c.l.b16 %v455
        %v725 = vunpack.c.h.b16 %v455
        %v726 = vunpack.c.l.b16 %v456
        %v727 = vunpack.c.h.b16 %v456
        %v728 = vunpack.c.l.b16 %v457
        %v729 = vunpack.c.h.b16 %v457
        %v730 = vunpack.c.l.b16 %v458
        %v731 = vunpack.c.h.b16 %v458
        %v732 = vunpack.c.l.b16 %v459
        %v733 = vunpack.c.h.b16 %v459
        %v734 = vunpack.c.l.b16 %v460
        %v735 = vunpack.c.h.b16 %v460
        %v736 = vunpack.c.l.b16 %v461
        %v737 = vunpack.c.h.b16 %v461
        %v738 = vunpack.c.l.b16 %v462
        %v739 = vunpack.c.h.b16 %v462
        %v740 = vunpack.c.l.b16 %v463
        %v741 = vunpack.c.h.b16 %v463
        %v742 = vunpack.c.l.b16 %v464
        %v743 = vunpack.c.h.b16 %v464
        %v744 = vunpack.c.l.b16 %v465
        %v745 = vunpack.c.h.b16 %v465
        %v746 = vunpack.c.l.b16 %v466
        %v747 = vunpack.c.h.b16 %v466
        %v748 = vunpack.c.l.b16 %v467
        %v749 = vunpack.c.h.b16 %v467
        %v750 = vunpack.c.l.b16 %v468
        %v751 = vunpack.c.h.b16 %v468
        %v752 = vunpack.c.l.b16 %v469
        %v753 = vunpack.c.h.b16 %v469
        %v754 = vunpack.c.l.b16 %v470
        %v755 = vunpack.c.h.b16 %v470
        %v756 = vunpack.c.l.b16 %v471
        %v757 = vunpack.c.h.b16 %v471
        %v758 = vunpack.c.l.b16 %v472
        %v759 = vunpack.c.h.b16 %v472
        %v760 = vunpack.c.l.b16 %v473
        %v761 = vunpack.c.h.b16 %v473
        %v762 = vunpack.c.l.b16 %v474
        %v763 = vunpack.c.h.b16 %v474
        %v764 = vunpack.c.l.b16 %v475
        %v765 = vunpack.c.h.b16 %v475
        %v766 = vunpack.c.l.b16 %v476
        %v767 = vunpack.c.h.b16 %v476
        %v768 = vunpack.c.l.b16 %v477
        %v769 = vunpack.c.h.b16 %v477
        %v770 = vunpack.c.l.b16 %v478
        %v771 = vunpack.c.h.b16 %v478
        %v772 = vunpack.c.l.b16 %v479
        %v773 = vunpack.c.h.b16 %v479
        %v774 = vunpack.c.l.b16 %v480
        %v775 = vunpack.c.h.b16 %v480
        %v776 = vunpack.c.l.b16 %v481
        %v777 = vunpack.c.h.b16 %v481
        %v778 = vunpack.c.l.b16 %v482
        %v779 = vunpack.c.h.b16 %v482
        %v780 = vunpack.c.l.b16 %v483
        %v781 = vunpack.c.h.b16 %v483
        %v782 = vunpack.c.l.b16 %v484
        %v783 = vunpack.c.h.b16 %v484
        %v784 = vunpack.c.l.b16 %v485
        %v785 = vunpack.c.h.b16 %v485
        %v786 = vunpack.c.l.b16 %v486
        %v787 = vunpack.c.h.b16 %v486
        %v788 = vunpack.c.l.b16 %v487
        %v789 = vunpack.c.h.b16 %v487
        %v790 = vunpack.c.l.b16 %v488
        %v791 = vunpack.c.h.b16 %v488
        %v792 = vunpack.c.l.b16 %v489
        %v793 = vunpack.c.h.b16 %v489
        %v794 = vunpack.c.l.b16 %v490
        %v795 = vunpack.c.h.b16 %v490
        %v796 = vunpack.c.l.b16 %v491
        %v797 = vunpack.c.h.b16 %v491
        %v798 = vunpack.c.l.b16 %v492
        %v799 = vunpack.c.h.b16 %v492
        %v800 = vunpack.c.l.b16 %v493
        %v801 = vunpack.c.h.b16 %v493
        %v802 = vunpack.c.l.b16 %v494
        %v803 = vunpack.c.h.b16 %v494
        %v804 = vunpack.c.l.b16 %v495
        %v805 = vunpack.c.h.b16 %v495
        %v806 = vunpack.c.l.b16 %v496
        %v807 = vunpack.c.h.b16 %v496
        %v808 = vunpack.c.l.b16 %v497
        %v809 = vunpack.c.h.b16 %v497
        %v810 = vunpack.c.l.b16 %v498
        %v811 = vunpack.c.h.b16 %v498
        %v812 = vunpack.c.l.b16 %v499
        %v813 = vunpack.c.h.b16 %v499
        %v814 = vunpack.c.l.b16 %v500
        %v815 = vunpack.c.h.b16 %v500
        %v816 = vunpack.c.l.b16 %v501
        %v817 = vunpack.c.h.b16 %v501
        %v818 = vunpack.c.l.b16 %v502
        %v819 = vunpack.c.h.b16 %v502
        %v820 = vunpack.c.l.b16 %v503
        %v821 = vunpack.c.h.b16 %v503
        %v822 = vunpack.c.l.b16 %v504
        %v823 = vunpack.c.h.b16 %v504
        %v824 = vunpack.c.l.b16 %v505
        %v825 = vunpack.c.h.b16 %v505
        %v826 = vunpack.c.l.b16 %v506
        %v827 = vunpack.c.h.b16 %v506
        %v828 = vunpack.c.l.b16 %v507
        %v829 = vunpack.c.h.b16 %v507
        %v830 = vunpack.c.l.b16 %v508
        %v831 = vunpack.c.h.b16 %v508
        %v832 = vunpack.c.l.b16 %v509
        %v833 = vunpack.c.h.b16 %v509
        %v834 = vunpack.c.l.b16 %v510
        %v835 = vunpack.c.h.b16 %v510
        %v836 = vunpack.c.l.b16 %v511
        %v837 = vunpack.c.h.b16 %v511
        %v838 = vunpack.c.l.b16 %v512
        %v839 = vunpack.c.h.b16 %v512
        %v840 = vunpack.c.l.b16 %v513
        %v841 = vunpack.c.h.b16 %v513
        %v842 = vunpack.c.l.b16 %v514
        %v843 = vunpack.c.h.b16 %v514
        %v844 = vunpack.c.l.b16 %v515
        %v845 = vunpack.c.h.b16 %v515
        %v846 = vunpack.c.l.b16 %v516
        %v847 = vunpack.c.h.b16 %v516
        %v848 = vunpack.c.l.b16 %v517
        %v849 = vunpack.c.h.b16 %v517
        %v850 = vunpack.c.l.b16 %v518
        %v851 = vunpack.c.h.b16 %v518
        %v852 = vunpack.c.l.b16 %v519
        %v853 = vunpack.c.h.b16 %v519
        %v854 = vunpack.c.l.b16 %v520
        %v855 = vunpack.c.h.b16 %v520
        %v856 = vunpack.c.l.b16 %v521
        %v857 = vunpack.c.h.b16 %v521
        %v858 = vunpack.c.l.b16 %v522
        %v859 = vunpack.c.h.b16 %v522
        %v860 = vunpack.c.l.b16 %v523
        %v861 = vunpack.c.h.b16 %v523
        %v862 = vunpack.c.l.b16 %v524
        %v863 = vunpack.c.h.b16 %v524
        %v864 = vunpack.c.l.b16 %v525
        %v865 = vunpack.c.h.b16 %v525
        %v866 = vunpack.c.l.b16 %v526
        %v867 = vunpack.c.h.b16 %v526
        %v868 = vunpack.c.l.b16 %v527
        %v869 = vunpack.c.h.b16 %v527
        %v870 = vunpack.c.l.b16 %v528
        %v871 = vunpack.c.h.b16 %v528
        %v872 = vunpack.c.l.b16 %v529
        %v873 = vunpack.c.h.b16 %v529
        %v874 = vunpack.c.l.b16 %v530
        %v875 = vunpack.c.h.b16 %v530
        %v876 = vunpack.c.l.b16 %v531
        %v877 = vunpack.c.h.b16 %v531
        %v878 = vunpack.c.l.b16 %v532
        %v879 = vunpack.c.h.b16 %v532
        %v880 = vunpack.c.l.b16 %v533
        %v881 = vunpack.c.h.b16 %v533
        %v882 = vunpack.c.l.b16 %v534
        %v883 = vunpack.c.h.b16 %v534
        %v884 = vunpack.c.l.b16 %v535
        %v885 = vunpack.c.h.b16 %v535
        %v886 = vunpack.c.l.b16 %v536
        %v887 = vunpack.c.h.b16 %v536
        %v888 = vunpack.c.l.b16 %v537
        %v889 = vunpack.c.h.b16 %v537
        %v890 = vunpack.c.l.b16 %v538
        %v891 = vunpack.c.h.b16 %v538
        %v892 = vunpack.c.l.b16 %v539
        %v893 = vunpack.c.h.b16 %v539
        %v894 = vunpack.c.l.b16 %v540
        %v895 = vunpack.c.h.b16 %v540
        %v896 = vunpack.c.l.b16 %v541
        %v897 = vunpack.c.h.b16 %v541
        %v898 = vunpack.c.l.b16 %v542
        %v899 = vunpack.c.h.b16 %v542
        %v900 = vunpack.c.l.b16 %v543
        %v901 = vunpack.c.h.b16 %v543
        %v902 = vunpack.c.l.b16 %v544
        %v903 = vunpack.c.h.b16 %v544
        %v904 = vunpack.c.l.b16 %v545
        %v905 = vunpack.c.h.b16 %v545
        %v906 = vunpack.c.l.b16 %v546
        %v907 = vunpack.c.h.b16 %v546
        %v908 = vunpack.c.l.b16 %v547
        %v909 = vunpack.c.h.b16 %v547
        %v910 = vunpack.c.l.b16 %v548
        %v911 = vunpack.c.h.b16 %v548
        %v912 = vunpack.c.l.b16 %v549
        %v913 = vunpack.c.h.b16 %v549
        %v914 = vunpack.c.l.b16 %v550
        %v915 = vunpack.c.h.b16 %v550
        %v916 = vunpack.c.l.b16 %v551
        %v917 = vunpack.c.h.b16 %v551
        %v918 = vunpack.c.l.b16 %v552
        %v919 = vunpack.c.h.b16 %v552
        %v920 = vunpack.c.l.b16 %v553
        %v921 = vunpack.c.h.b16 %v553
        %v922 = vunpack.c.l.b16 %v554
        %v923 = vunpack.c.h.b16 %v554
        %v924 = vunpack.c.l.b16 %v555
        %v925 = vunpack.c.h.b16 %v555
        %v926 = vunpack.c.l.b16 %v556
        %v927 = vunpack.c.h.b16 %v556
        %v928 = vunpack.c.l.b16 %v557
        %v929 = vunpack.c.h.b16 %v557
        %v930 = vunpack.c.l.b16 %v558
        %v931 = vunpack.c.h.b16 %v558
        %v932 = vunpack.c.l.b16 %v559
        %v933 = vunpack.c.h.b16 %v559
        %v934 = vunpack.c.l.b16 %v560
        %v935 = vunpack.c.h.b16 %v560
        %v936 = vunpack.c.l.b16 %v561
        %v937 = vunpack.c.h.b16 %v561
        %v938 = vunpack.c.l.b16 %v562
        %v939 = vunpack.c.h.b16 %v562
        %v940 = vunpack.c.l.b16 %v563
        %v941 = vunpack.c.h.b16 %v563
        %v942 = vunpack.c.l.b16 %v564
        %v943 = vunpack.c.h.b16 %v564
        %v944 = vunpack.c.l.b16 %v565
        %v945 = vunpack.c.h.b16 %v565
        %v946 = vunpack.c.l.b16 %v566
        %v947 = vunpack.c.h.b16 %v566
        %v948 = vunpack.c.l.b16 %v567
        %v949 = vunpack.c.h.b16 %v567
        %v950 = vunpack.c.l.b16 %v568
        %v951 = vunpack.c.h.b16 %v568
        %v952 = vunpack.c.l.b16 %v569
        %v953 = vunpack.c.h.b16 %v569
        %v954 = vunpack.c.l.b16 %v570
        %v955 = vunpack.c.h.b16 %v570
        %v956 = vunpack.c.l.b16 %v571
        %v957 = vunpack.c.h.b16 %v571
        %v958 = vunpack.c.l.b16 %v572
        %v959 = vunpack.c.h.b16 %v572
        %v960 = vunpack.c.l.b16 %v573
        %v961 = vunpack.c.h.b16 %v573
        %v962 = vunpack.c.l.b16 %v574
        %v963 = vunpack.c.h.b16 %v574
        %v964 = vunpack.c.l.b16 %v575
        %v965 = vunpack.c.h.b16 %v575
        %v966 = vunpack.c.l.b16 %v576
        %v967 = vunpack.c.h.b16 %v576
        %v968 = vunpack.c.l.b16 %v577
        %v969 = vunpack.c.h.b16 %v577
        %v970 = vunpack.c.l.b16 %v578
        %v971 = vunpack.c.h.b16 %v578
        %v972 = vunpack.c.l.b16 %v579
        %v973 = vunpack.c.h.b16 %v579
        %v974 = vunpack.c.l.b16 %v580
        %v975 = vunpack.c.h.b16 %v580
        %v976 = vunpack.c.l.b16 %v581
        %v977 = vunpack.c.h.b16 %v581
        %v978 = vpack.c.b16 %v724, %v722
        %v979 = vpack.c.b16 %v725, %v723
        %v980 = vpack.c.b16 %v728, %v726
        %v981 = vpack.c.b16 %v729, %v727
        %v982 = vpack.c.b16 %v732, %v730
        %v983 = vpack.c.b16 %v733, %v731
        %v984 = vpack.c.b16 %v736, %v734
        %v985 = vpack.c.b16 %v737, %v735
        %v986 = vpack.c.b16 %v740, %v738
        %v987 = vpack.c.b16 %v741, %v739
        %v988 = vpack.c.b16 %v744, %v742
        %v989 = vpack.c.b16 %v745, %v743
        %v990 = vpack.c.b16 %v748, %v746
        %v991 = vpack.c.b16 %v749, %v747
        %v992 = vpack.c.b16 %v752, %v750
        %v993 = vpack.c.b16 %v753, %v751
        %v994 = vpack.c.b16 %v756, %v754
        %v995 = vpack.c.b16 %v757, %v755
        %v996 = vpack.c.b16 %v760, %v758
        %v997 = vpack.c.b16 %v761, %v759
        %v998 = vpack.c.b16 %v764, %v762
        %v999 = vpack.c.b16 %v765, %v763
        %v1000 = vpack.c.b16 %v768, %v766
        %v1001 = vpack.c.b16 %v769, %v767
        %v1002 = vpack.c.b16 %v772, %v770
        %v1003 = vpack.c.b16 %v773, %v771
        %v1004 = vpack.c.b16 %v776, %v774
        %v1005 = vpack.c.b16 %v777, %v775
        %v1006 = vpack.c.b16 %v780, %v778
        %v1007 = vpack.c.b16 %v781, %v779
        %v1008 = vpack.c.b16 %v784, %v782
        %v1009 = vpack.c.b16 %v785, %v783
        %v1010 = vpack.c.b16 %v788, %v786
        %v1011 = vpack.c.b16 %v789, %v787
        %v1012 = vpack.c.b16 %v792, %v790
        %v1013 = vpack.c.b16 %v793, %v791
        %v1014 = vpack.c.b16 %v796, %v794
        %v1015 = vpack.c.b16 %v797, %v795
        %v1016 = vpack.c.b16 %v800, %v798
        %v1017 = vpack.c.b16 %v801, %v799
        %v1018 = vpack.c.b16 %v804, %v802
        %v1019 = vpack.c.b16 %v805, %v803
        %v1020 = vpack.c.b16 %v808, %v806
        %v1021 = vpack.c.b16 %v809, %v807
        %v1022 = vpack.c.b16 %v812, %v810
        %v1023 = vpack.c.b16 %v813, %v811
        %v1024 = vpack.c.b16 %v816, %v814
        %v1025 = vpack.c.b16 %v817, %v815
        %v1026 = vpack.c.b16 %v820, %v818
        %v1027 = vpack.c.b16 %v821, %v819
        %v1028 = vpack.c.b16 %v824, %v822
        %v1029 = vpack.c.b16 %v825, %v823
        %v1030 = vpack.c.b16 %v828, %v826
        %v1031 = vpack.c.b16 %v829, %v827
        %v1032 = vpack.c.b16 %v832, %v830
        %v1033 = vpack.c.b16 %v833, %v831
        %v1034 = vpack.c.b16 %v836, %v834
        %v1035 = vpack.c.b16 %v837, %v835
        %v1036 = vpack.c.b16 %v840, %v838
        %v1037 = vpack.c.b16 %v841, %v839
        %v1038 = vpack.c.b16 %v844, %v842
        %v1039 = vpack.c.b16 %v845, %v843
        %v1040 = vpack.c.b16 %v848, %v846
        %v1041 = vpack.c.b16 %v849, %v847
        %v1042 = vpack.c.b16 %v852, %v850
        %v1043 = vpack.c.b16 %v853, %v851
        %v1044 = vpack.c.b16 %v856, %v854
        %v1045 = vpack.c.b16 %v857, %v855
        %v1046 = vpack.c.b16 %v860, %v858
        %v1047 = vpack.c.b16 %v861, %v859
        %v1048 = vpack.c.b16 %v864, %v862
        %v1049 = vpack.c.b16 %v865, %v863
        %v1050 = vpack.c.b16 %v868, %v866
        %v1051 = vpack.c.b16 %v869, %v867
        %v1052 = vpack.c.b16 %v872, %v870
        %v1053 = vpack.c.b16 %v873, %v871
        %v1054 = vpack.c.b16 %v876, %v874
        %v1055 = vpack.c.b16 %v877, %v875
        %v1056 = vpack.c.b16 %v880, %v878
        %v1057 = vpack.c.b16 %v881, %v879
        %v1058 = vpack.c.b16 %v884, %v882
        %v1059 = vpack.c.b16 %v885, %v883
        %v1060 = vpack.c.b16 %v888, %v886
        %v1061 = vpack.c.b16 %v889, %v887
        %v1062 = vpack.c.b16 %v892, %v890
        %v1063 = vpack.c.b16 %v893, %v891
        %v1064 = vpack.c.b16 %v896, %v894
        %v1065 = vpack.c.b16 %v897, %v895
        %v1066 = vpack.c.b16 %v900, %v898
        %v1067 = vpack.c.b16 %v901, %v899
        %v1068 = vpack.c.b16 %v904, %v902
        %v1069 = vpack.c.b16 %v905, %v903
        %v1070 = vpack.c.b16 %v908, %v906
        %v1071 = vpack.c.b16 %v909, %v907
        %v1072 = vpack.c.b16 %v912, %v910
        %v1073 = vpack.c.b16 %v913, %v911
        %v1074 = vpack.c.b16 %v916, %v914
        %v1075 = vpack.c.b16 %v917, %v915
        %v1076 = vpack.c.b16 %v920, %v918
        %v1077 = vpack.c.b16 %v921, %v919
        %v1078 = vpack.c.b16 %v924, %v922
        %v1079 = vpack.c.b16 %v925, %v923
        %v1080 = vpack.c.b16 %v928, %v926
        %v1081 = vpack.c.b16 %v929, %v927
        %v1082 = vpack.c.b16 %v932, %v930
        %v1083 = vpack.c.b16 %v933, %v931
        %v1084 = vpack.c.b16 %v936, %v934
        %v1085 = vpack.c.b16 %v937, %v935
        %v1086 = vpack.c.b16 %v940, %v938
        %v1087 = vpack.c.b16 %v941, %v939
        %v1088 = vpack.c.b16 %v944, %v942
        %v1089 = vpack.c.b16 %v945, %v943
        %v1090 = vpack.c.b16 %v948, %v946
        %v1091 = vpack.c.b16 %v949, %v947
        %v1092 = vpack.c.b16 %v952, %v950
        %v1093 = vpack.c.b16 %v953, %v951
        %v1094 = vpack.c.b16 %v956, %v954
        %v1095 = vpack.c.b16 %v957, %v955
        %v1096 = vpack.c.b16 %v960, %v958
        %v1097 = vpack.c.b16 %v961, %v959
        %v1098 = vpack.c.b16 %v964, %v962
        %v1099 = vpack.c.b16 %v965, %v963
        %v1100 = vpack.c.b16 %v968, %v966
        %v1101 = vpack.c.b16 %v969, %v967
        %v1102 = vpack.c.b16 %v972, %v970
        %v1103 = vpack.c.b16 %v973, %v971
        %v1104 = vpack.c.b16 %v976, %v974
        %v1105 = vpack.c.b16 %v977, %v975
        %1234 = vmatprep.subr.bf16.mxu0 %v993
        %1235 = vmatpush1.bf16.msra.mxu0 %v992
        %1236 = vmatprep.subr.bf16.mxu0 %v991
        %1237 = vmatpush1.bf16.msra.mxu0 %v990
        %1238 = vmatprep.subr.bf16.mxu0 %v989
        %1239 = vmatpush1.bf16.msra.mxu0 %v988
        %1240 = vmatprep.subr.bf16.mxu0 %v987
        %1241 = vmatpush1.bf16.msra.mxu0 %v986
        %1242 = vmatprep.subr.bf16.mxu0 %v985
        %1243 = vmatpush1.bf16.msra.mxu0 %v984
        %1244 = vmatprep.subr.bf16.mxu0 %v983
        %1245 = vmatpush1.bf16.msra.mxu0 %v982
        %1246 = vmatprep.subr.bf16.mxu0 %v981
        %1247 = vmatpush1.bf16.msra.mxu0 %v980
        %1248 = vmatprep.subr.bf16.mxu0 %v979
        %1249 = vmatpush1.bf16.msra.mxu0 %v978
        %1250 = vmatprep.subr.bf16.mxu0 %v1009
        %1251 = vmatpush2.bf16.msra.mxu0 %v1008
        %1252 = vmatprep.subr.bf16.mxu0 %v1007
        %1253 = vmatpush2.bf16.msra.mxu0 %v1006
        %1254 = vmatprep.subr.bf16.mxu0 %v1005
        %1255 = vmatpush2.bf16.msra.mxu0 %v1004
        %1256 = vmatprep.subr.bf16.mxu0 %v1003
        %1257 = vmatpush2.bf16.msra.mxu0 %v1002
        %1258 = vmatprep.subr.bf16.mxu0 %v1001
        %1259 = vmatpush2.bf16.msra.mxu0 %v1000
        %1260 = vmatprep.subr.bf16.mxu0 %v999
        %1261 = vmatpush2.bf16.msra.mxu0 %v998
        %1262 = vmatprep.subr.bf16.mxu0 %v997
        %1263 = vmatpush2.bf16.msra.mxu0 %v996
        %1264 = vmatprep.subr.bf16.mxu0 %v995
        %1265 = vmatpush2.bf16.msra.mxu0 %v994
        %1266 = vmatprep.mubr.bf16.mxu0 %v391
        %1267 = vmatmul.mubr.bf16.gmra.mxu0 %v390
        %v1268 = vpop.f32.mrf.mxu0
        %v1269 = vadd.f32 %v587, %v1268
        %v1270 = vpop.f32.mrf.mxu0
        %v1271 = vadd.f32 %v591, %v1270
        %v1272 = vpop.f32.mrf.mxu0
        %v1273 = vadd.f32 %v587, %v1272
        %v1274 = vpop.f32.mrf.mxu0
        %v1275 = vadd.f32 %v591, %v1274
        %1276 = vmatprep.mubr.bf16.mxu0 %v399
        %1277 = vmatmul.mubr.bf16.gmra.mxu0 %v398
        %v1278 = vpop.f32.mrf.mxu0
        %v1279 = vadd.f32 %v587, %v1278
        %v1280 = vpop.f32.mrf.mxu0
        %v1281 = vadd.f32 %v591, %v1280
        %v1282 = vpop.f32.mrf.mxu0
        %v1283 = vadd.f32 %v587, %v1282
        %v1284 = vpop.f32.mrf.mxu0
        %v1285 = vadd.f32 %v591, %v1284
        %1286 = vmatprep.mubr.bf16.mxu0 %v407
        %1287 = vmatmul.mubr.bf16.gmra.mxu0 %v406
        %v1288 = vpop.f32.mrf.mxu0
        %v1289 = vadd.f32 %v587, %v1288
        %v1290 = vpop.f32.mrf.mxu0
        %v1291 = vadd.f32 %v591, %v1290
        %v1292 = vpop.f32.mrf.mxu0
        %v1293 = vadd.f32 %v587, %v1292
        %v1294 = vpop.f32.mrf.mxu0
        %v1295 = vadd.f32 %v591, %v1294
        %1296 = vmatprep.mubr.bf16.mxu0 %v415
        %1297 = vmatmul.mubr.bf16.gmra.mxu0 %v414
        %v1298 = vpop.f32.mrf.mxu0
        %v1299 = vadd.f32 %v587, %v1298
        %v1300 = vpop.f32.mrf.mxu0
        %v1301 = vadd.f32 %v591, %v1300
        %v1302 = vpop.f32.mrf.mxu0
        %v1303 = vadd.f32 %v587, %v1302
        %v1304 = vpop.f32.mrf.mxu0
        %v1305 = vadd.f32 %v591, %v1304
        %1306 = vmatprep.mubr.bf16.mxu0 %v423
        %1307 = vmatmul.mubr.bf16.gmra.mxu0 %v422
        %v1308 = vpop.f32.mrf.mxu0
        %v1309 = vadd.f32 %v587, %v1308
        %v1310 = vpop.f32.mrf.mxu0
        %v1311 = vadd.f32 %v591, %v1310
        %v1312 = vpop.f32.mrf.mxu0
        %v1313 = vadd.f32 %v587, %v1312
        %v1314 = vpop.f32.mrf.mxu0
        %v1315 = vadd.f32 %v591, %v1314
        %1316 = vmatprep.mubr.bf16.mxu0 %v431
        %1317 = vmatmul.mubr.bf16.gmra.mxu0 %v430
        %v1318 = vpop.f32.mrf.mxu0
        %v1319 = vadd.f32 %v587, %v1318
        %v1320 = vpop.f32.mrf.mxu0
        %v1321 = vadd.f32 %v591, %v1320
        %v1322 = vpop.f32.mrf.mxu0
        %v1323 = vadd.f32 %v587, %v1322
        %v1324 = vpop.f32.mrf.mxu0
        %v1325 = vadd.f32 %v591, %v1324
        %1326 = vmatprep.mubr.bf16.mxu0 %v439
        %1327 = vmatmul.mubr.bf16.gmra.mxu0 %v438
        %v1328 = vpop.f32.mrf.mxu0
        %v1329 = vadd.f32 %v587, %v1328
        %v1330 = vpop.f32.mrf.mxu0
        %v1331 = vadd.f32 %v591, %v1330
        %v1332 = vpop.f32.mrf.mxu0
        %v1333 = vadd.f32 %v587, %v1332
        %v1334 = vpop.f32.mrf.mxu0
        %v1335 = vadd.f32 %v591, %v1334
        %1336 = vmatprep.mubr.bf16.mxu0 %v447
        %1337 = vmatmul.mubr.bf16.gmra.mxu0 %v446
        %v1338 = vpop.f32.mrf.mxu0
        %v1339 = vadd.f32 %v587, %v1338
        %v1340 = vpop.f32.mrf.mxu0
        %v1341 = vadd.f32 %v591, %v1340
        %v1342 = vpop.f32.mrf.mxu0
        %v1343 = vadd.f32 %v587, %v1342
        %v1344 = vpop.f32.mrf.mxu0
        %v1345 = vadd.f32 %v591, %v1344
        %1346 = vdwg.mxu0
        %1347 = vmatprep.subr.bf16.mxu0 %v1025
        %1348 = vmatpush1.bf16.msra.mxu0 %v1024
        %1349 = vmatprep.subr.bf16.mxu0 %v1023
        %1350 = vmatpush1.bf16.msra.mxu0 %v1022
        %1351 = vmatprep.subr.bf16.mxu0 %v1021
        %1352 = vmatpush1.bf16.msra.mxu0 %v1020
        %1353 = vmatprep.subr.bf16.mxu0 %v1019
        %1354 = vmatpush1.bf16.msra.mxu0 %v1018
        %1355 = vmatprep.subr.bf16.mxu0 %v1017
        %1356 = vmatpush1.bf16.msra.mxu0 %v1016
        %1357 = vmatprep.subr.bf16.mxu0 %v1015
        %1358 = vmatpush1.bf16.msra.mxu0 %v1014
        %1359 = vmatprep.subr.bf16.mxu0 %v1013
        %1360 = vmatpush1.bf16.msra.mxu0 %v1012
        %1361 = vmatprep.subr.bf16.mxu0 %v1011
        %1362 = vmatpush1.bf16.msra.mxu0 %v1010
        %1363 = vmatprep.subr.bf16.mxu0 %v1041
        %1364 = vmatpush2.bf16.msra.mxu0 %v1040
        %1365 = vmatprep.subr.bf16.mxu0 %v1039
        %1366 = vmatpush2.bf16.msra.mxu0 %v1038
        %1367 = vmatprep.subr.bf16.mxu0 %v1037
        %1368 = vmatpush2.bf16.msra.mxu0 %v1036
        %1369 = vmatprep.subr.bf16.mxu0 %v1035
        %1370 = vmatpush2.bf16.msra.mxu0 %v1034
        %1371 = vmatprep.subr.bf16.mxu0 %v1033
        %1372 = vmatpush2.bf16.msra.mxu0 %v1032
        %1373 = vmatprep.subr.bf16.mxu0 %v1031
        %1374 = vmatpush2.bf16.msra.mxu0 %v1030
        %1375 = vmatprep.subr.bf16.mxu0 %v1029
        %1376 = vmatpush2.bf16.msra.mxu0 %v1028
        %1377 = vmatprep.subr.bf16.mxu0 %v1027
        %1378 = vmatpush2.bf16.msra.mxu0 %v1026
        %1379 = vmatprep.mubr.bf16.mxu0 %v393
        %1380 = vmatmul.mubr.bf16.gmra.mxu0 %v392
        %v1381 = vpop.f32.mrf.mxu0
        %v1382 = vadd.f32 %v1269, %v1381
        %v1383 = vpop.f32.mrf.mxu0
        %v1384 = vadd.f32 %v1271, %v1383
        %v1385 = vpop.f32.mrf.mxu0
        %v1386 = vadd.f32 %v1273, %v1385
        %v1387 = vpop.f32.mrf.mxu0
        %v1388 = vadd.f32 %v1275, %v1387
        %1389 = vmatprep.mubr.bf16.mxu0 %v401
        %1390 = vmatmul.mubr.bf16.gmra.mxu0 %v400
        %v1391 = vpop.f32.mrf.mxu0
        %v1392 = vadd.f32 %v1279, %v1391
        %v1393 = vpop.f32.mrf.mxu0
        %v1394 = vadd.f32 %v1281, %v1393
        %v1395 = vpop.f32.mrf.mxu0
        %v1396 = vadd.f32 %v1283, %v1395
        %v1397 = vpop.f32.mrf.mxu0
        %v1398 = vadd.f32 %v1285, %v1397
        %1399 = vmatprep.mubr.bf16.mxu0 %v409
        %1400 = vmatmul.mubr.bf16.gmra.mxu0 %v408
        %v1401 = vpop.f32.mrf.mxu0
        %v1402 = vadd.f32 %v1289, %v1401
        %v1403 = vpop.f32.mrf.mxu0
        %v1404 = vadd.f32 %v1291, %v1403
        %v1405 = vpop.f32.mrf.mxu0
        %v1406 = vadd.f32 %v1293, %v1405
        %v1407 = vpop.f32.mrf.mxu0
        %v1408 = vadd.f32 %v1295, %v1407
        %1409 = vmatprep.mubr.bf16.mxu0 %v417
        %1410 = vmatmul.mubr.bf16.gmra.mxu0 %v416
        %v1411 = vpop.f32.mrf.mxu0
        %v1412 = vadd.f32 %v1299, %v1411
        %v1413 = vpop.f32.mrf.mxu0
        %v1414 = vadd.f32 %v1301, %v1413
        %v1415 = vpop.f32.mrf.mxu0
        %v1416 = vadd.f32 %v1303, %v1415
        %v1417 = vpop.f32.mrf.mxu0
        %v1418 = vadd.f32 %v1305, %v1417
        %1419 = vmatprep.mubr.bf16.mxu0 %v425
        %1420 = vmatmul.mubr.bf16.gmra.mxu0 %v424
        %v1421 = vpop.f32.mrf.mxu0
        %v1422 = vadd.f32 %v1309, %v1421
        %v1423 = vpop.f32.mrf.mxu0
        %v1424 = vadd.f32 %v1311, %v1423
        %v1425 = vpop.f32.mrf.mxu0
        %v1426 = vadd.f32 %v1313, %v1425
        %v1427 = vpop.f32.mrf.mxu0
        %v1428 = vadd.f32 %v1315, %v1427
        %1429 = vmatprep.mubr.bf16.mxu0 %v433
        %1430 = vmatmul.mubr.bf16.gmra.mxu0 %v432
        %v1431 = vpop.f32.mrf.mxu0
        %v1432 = vadd.f32 %v1319, %v1431
        %v1433 = vpop.f32.mrf.mxu0
        %v1434 = vadd.f32 %v1321, %v1433
        %v1435 = vpop.f32.mrf.mxu0
        %v1436 = vadd.f32 %v1323, %v1435
        %v1437 = vpop.f32.mrf.mxu0
        %v1438 = vadd.f32 %v1325, %v1437
        %1439 = vmatprep.mubr.bf16.mxu0 %v441
        %1440 = vmatmul.mubr.bf16.gmra.mxu0 %v440
        %v1441 = vpop.f32.mrf.mxu0
        %v1442 = vadd.f32 %v1329, %v1441
        %v1443 = vpop.f32.mrf.mxu0
        %v1444 = vadd.f32 %v1331, %v1443
        %v1445 = vpop.f32.mrf.mxu0
        %v1446 = vadd.f32 %v1333, %v1445
        %v1447 = vpop.f32.mrf.mxu0
        %v1448 = vadd.f32 %v1335, %v1447
        %1449 = vmatprep.mubr.bf16.mxu0 %v449
        %1450 = vmatmul.mubr.bf16.gmra.mxu0 %v448
        %v1451 = vpop.f32.mrf.mxu0
        %v1452 = vadd.f32 %v1339, %v1451
        %v1453 = vpop.f32.mrf.mxu0
        %v1454 = vadd.f32 %v1341, %v1453
        %v1455 = vpop.f32.mrf.mxu0
        %v1456 = vadd.f32 %v1343, %v1455
        %v1457 = vpop.f32.mrf.mxu0
        %v1458 = vadd.f32 %v1345, %v1457
        %1459 = vdwg.mxu0
        %1460 = vmatprep.subr.bf16.mxu0 %v1057
        %1461 = vmatpush1.bf16.msra.mxu0 %v1056
        %1462 = vmatprep.subr.bf16.mxu0 %v1055
        %1463 = vmatpush1.bf16.msra.mxu0 %v1054
        %1464 = vmatprep.subr.bf16.mxu0 %v1053
        %1465 = vmatpush1.bf16.msra.mxu0 %v1052
        %1466 = vmatprep.subr.bf16.mxu0 %v1051
        %1467 = vmatpush1.bf16.msra.mxu0 %v1050
        %1468 = vmatprep.subr.bf16.mxu0 %v1049
        %1469 = vmatpush1.bf16.msra.mxu0 %v1048
        %1470 = vmatprep.subr.bf16.mxu0 %v1047
        %1471 = vmatpush1.bf16.msra.mxu0 %v1046
        %1472 = vmatprep.subr.bf16.mxu0 %v1045
        %1473 = vmatpush1.bf16.msra.mxu0 %v1044
        %1474 = vmatprep.subr.bf16.mxu0 %v1043
        %1475 = vmatpush1.bf16.msra.mxu0 %v1042
        %1476 = vmatprep.subr.bf16.mxu0 %v1073
        %1477 = vmatpush2.bf16.msra.mxu0 %v1072
        %1478 = vmatprep.subr.bf16.mxu0 %v1071
        %1479 = vmatpush2.bf16.msra.mxu0 %v1070
        %1480 = vmatprep.subr.bf16.mxu0 %v1069
        %1481 = vmatpush2.bf16.msra.mxu0 %v1068
        %1482 = vmatprep.subr.bf16.mxu0 %v1067
        %1483 = vmatpush2.bf16.msra.mxu0 %v1066
        %1484 = vmatprep.subr.bf16.mxu0 %v1065
        %1485 = vmatpush2.bf16.msra.mxu0 %v1064
        %1486 = vmatprep.subr.bf16.mxu0 %v1063
        %1487 = vmatpush2.bf16.msra.mxu0 %v1062
        %1488 = vmatprep.subr.bf16.mxu0 %v1061
        %1489 = vmatpush2.bf16.msra.mxu0 %v1060
        %1490 = vmatprep.subr.bf16.mxu0 %v1059
        %1491 = vmatpush2.bf16.msra.mxu0 %v1058
        %1492 = vmatprep.mubr.bf16.mxu0 %v395
        %1493 = vmatmul.mubr.bf16.gmra.mxu0 %v394
        %v1494 = vpop.f32.mrf.mxu0
        %v1495 = vadd.f32 %v1382, %v1494
        %v1496 = vpop.f32.mrf.mxu0
        %v1497 = vadd.f32 %v1384, %v1496
        %v1498 = vpop.f32.mrf.mxu0
        %v1499 = vadd.f32 %v1386, %v1498
        %v1500 = vpop.f32.mrf.mxu0
        %v1501 = vadd.f32 %v1388, %v1500
        %1502 = vmatprep.mubr.bf16.mxu0 %v403
        %1503 = vmatmul.mubr.bf16.gmra.mxu0 %v402
        %v1504 = vpop.f32.mrf.mxu0
        %v1505 = vadd.f32 %v1392, %v1504
        %v1506 = vpop.f32.mrf.mxu0
        %v1507 = vadd.f32 %v1394, %v1506
        %v1508 = vpop.f32.mrf.mxu0
        %v1509 = vadd.f32 %v1396, %v1508
        %v1510 = vpop.f32.mrf.mxu0
        %v1511 = vadd.f32 %v1398, %v1510
        %1512 = vmatprep.mubr.bf16.mxu0 %v411
        %1513 = vmatmul.mubr.bf16.gmra.mxu0 %v410
        %v1514 = vpop.f32.mrf.mxu0
        %v1515 = vadd.f32 %v1402, %v1514
        %v1516 = vpop.f32.mrf.mxu0
        %v1517 = vadd.f32 %v1404, %v1516
        %v1518 = vpop.f32.mrf.mxu0
        %v1519 = vadd.f32 %v1406, %v1518
        %v1520 = vpop.f32.mrf.mxu0
        %v1521 = vadd.f32 %v1408, %v1520
        %1522 = vmatprep.mubr.bf16.mxu0 %v419
        %1523 = vmatmul.mubr.bf16.gmra.mxu0 %v418
        %v1524 = vpop.f32.mrf.mxu0
        %v1525 = vadd.f32 %v1412, %v1524
        %v1526 = vpop.f32.mrf.mxu0
        %v1527 = vadd.f32 %v1414, %v1526
        %v1528 = vpop.f32.mrf.mxu0
        %v1529 = vadd.f32 %v1416, %v1528
        %v1530 = vpop.f32.mrf.mxu0
        %v1531 = vadd.f32 %v1418, %v1530
        %1532 = vmatprep.mubr.bf16.mxu0 %v427
        %1533 = vmatmul.mubr.bf16.gmra.mxu0 %v426
        %v1534 = vpop.f32.mrf.mxu0
        %v1535 = vadd.f32 %v1422, %v1534
        %v1536 = vpop.f32.mrf.mxu0
        %v1537 = vadd.f32 %v1424, %v1536
        %v1538 = vpop.f32.mrf.mxu0
        %v1539 = vadd.f32 %v1426, %v1538
        %v1540 = vpop.f32.mrf.mxu0
        %v1541 = vadd.f32 %v1428, %v1540
        %1542 = vmatprep.mubr.bf16.mxu0 %v435
        %1543 = vmatmul.mubr.bf16.gmra.mxu0 %v434
        %v1544 = vpop.f32.mrf.mxu0
        %v1545 = vadd.f32 %v1432, %v1544
        %v1546 = vpop.f32.mrf.mxu0
        %v1547 = vadd.f32 %v1434, %v1546
        %v1548 = vpop.f32.mrf.mxu0
        %v1549 = vadd.f32 %v1436, %v1548
        %v1550 = vpop.f32.mrf.mxu0
        %v1551 = vadd.f32 %v1438, %v1550
        %1552 = vmatprep.mubr.bf16.mxu0 %v443
        %1553 = vmatmul.mubr.bf16.gmra.mxu0 %v442
        %v1554 = vpop.f32.mrf.mxu0
        %v1555 = vadd.f32 %v1442, %v1554
        %v1556 = vpop.f32.mrf.mxu0
        %v1557 = vadd.f32 %v1444, %v1556
        %v1558 = vpop.f32.mrf.mxu0
        %v1559 = vadd.f32 %v1446, %v1558
        %v1560 = vpop.f32.mrf.mxu0
        %v1561 = vadd.f32 %v1448, %v1560
        %1562 = vmatprep.mubr.bf16.mxu0 %v451
        %1563 = vmatmul.mubr.bf16.gmra.mxu0 %v450
        %v1564 = vpop.f32.mrf.mxu0
        %v1565 = vadd.f32 %v1452, %v1564
        %v1566 = vpop.f32.mrf.mxu0
        %v1567 = vadd.f32 %v1454, %v1566
        %v1568 = vpop.f32.mrf.mxu0
        %v1569 = vadd.f32 %v1456, %v1568
        %v1570 = vpop.f32.mrf.mxu0
        %v1571 = vadd.f32 %v1458, %v1570
        %1572 = vdwg.mxu0
        %1573 = vmatprep.subr.bf16.mxu0 %v1089
        %1574 = vmatpush1.bf16.msra.mxu0 %v1088
        %1575 = vmatprep.subr.bf16.mxu0 %v1087
        %1576 = vmatpush1.bf16.msra.mxu0 %v1086
        %1577 = vmatprep.subr.bf16.mxu0 %v1085
        %1578 = vmatpush1.bf16.msra.mxu0 %v1084
        %1579 = vmatprep.subr.bf16.mxu0 %v1083
        %1580 = vmatpush1.bf16.msra.mxu0 %v1082
        %1581 = vmatprep.subr.bf16.mxu0 %v1081
        %1582 = vmatpush1.bf16.msra.mxu0 %v1080
        %1583 = vmatprep.subr.bf16.mxu0 %v1079
        %1584 = vmatpush1.bf16.msra.mxu0 %v1078
        %1585 = vmatprep.subr.bf16.mxu0 %v1077
        %1586 = vmatpush1.bf16.msra.mxu0 %v1076
        %1587 = vmatprep.subr.bf16.mxu0 %v1075
        %1588 = vmatpush1.bf16.msra.mxu0 %v1074
        %1589 = vmatprep.subr.bf16.mxu0 %v1105
        %1590 = vmatpush2.bf16.msra.mxu0 %v1104
        %1591 = vmatprep.subr.bf16.mxu0 %v1103
        %1592 = vmatpush2.bf16.msra.mxu0 %v1102
        %1593 = vmatprep.subr.bf16.mxu0 %v1101
        %1594 = vmatpush2.bf16.msra.mxu0 %v1100
        %1595 = vmatprep.subr.bf16.mxu0 %v1099
        %1596 = vmatpush2.bf16.msra.mxu0 %v1098
        %1597 = vmatprep.subr.bf16.mxu0 %v1097
        %1598 = vmatpush2.bf16.msra.mxu0 %v1096
        %1599 = vmatprep.subr.bf16.mxu0 %v1095
        %1600 = vmatpush2.bf16.msra.mxu0 %v1094
        %1601 = vmatprep.subr.bf16.mxu0 %v1093
        %1602 = vmatpush2.bf16.msra.mxu0 %v1092
        %1603 = vmatprep.subr.bf16.mxu0 %v1091
        %1604 = vmatpush2.bf16.msra.mxu0 %v1090
        %1605 = vmatprep.mubr.bf16.mxu0 %v397
        %1606 = vmatmul.mubr.bf16.gmra.mxu0 %v396
        %v1607 = vpop.f32.mrf.mxu0
        %v1608 = vadd.f32 %v1495, %v1607
        %v1609 = vpop.f32.mrf.mxu0
        %v1610 = vadd.f32 %v1497, %v1609
        %v1611 = vpop.f32.mrf.mxu0
        %v1612 = vadd.f32 %v1499, %v1611
        %v1613 = vpop.f32.mrf.mxu0
        %v1614 = vadd.f32 %v1501, %v1613
        %1615 = vmatprep.mubr.bf16.mxu0 %v405
        %1616 = vmatmul.mubr.bf16.gmra.mxu0 %v404
        %v1617 = vpop.f32.mrf.mxu0
        %v1618 = vadd.f32 %v1505, %v1617
        %v1619 = vpop.f32.mrf.mxu0
        %v1620 = vadd.f32 %v1507, %v1619
        %v1621 = vpop.f32.mrf.mxu0
        %v1622 = vadd.f32 %v1509, %v1621
        %v1623 = vpop.f32.mrf.mxu0
        %v1624 = vadd.f32 %v1511, %v1623
        %1625 = vmatprep.mubr.bf16.mxu0 %v413
        %1626 = vmatmul.mubr.bf16.gmra.mxu0 %v412
        %v1627 = vpop.f32.mrf.mxu0
        %v1628 = vadd.f32 %v1515, %v1627
        %v1629 = vpop.f32.mrf.mxu0
        %v1630 = vadd.f32 %v1517, %v1629
        %v1631 = vpop.f32.mrf.mxu0
        %v1632 = vadd.f32 %v1519, %v1631
        %v1633 = vpop.f32.mrf.mxu0
        %v1634 = vadd.f32 %v1521, %v1633
        %1635 = vmatprep.mubr.bf16.mxu0 %v421
        %1636 = vmatmul.mubr.bf16.gmra.mxu0 %v420
        %v1637 = vpop.f32.mrf.mxu0
        %v1638 = vadd.f32 %v1525, %v1637
        %v1639 = vpop.f32.mrf.mxu0
        %v1640 = vadd.f32 %v1527, %v1639
        %v1641 = vpop.f32.mrf.mxu0
        %v1642 = vadd.f32 %v1529, %v1641
        %v1643 = vpop.f32.mrf.mxu0
        %v1644 = vadd.f32 %v1531, %v1643
        %1645 = vmatprep.mubr.bf16.mxu0 %v429
        %1646 = vmatmul.mubr.bf16.gmra.mxu0 %v428
        %v1647 = vpop.f32.mrf.mxu0
        %v1648 = vadd.f32 %v1535, %v1647
        %v1649 = vpop.f32.mrf.mxu0
        %v1650 = vadd.f32 %v1537, %v1649
        %v1651 = vpop.f32.mrf.mxu0
        %v1652 = vadd.f32 %v1539, %v1651
        %v1653 = vpop.f32.mrf.mxu0
        %v1654 = vadd.f32 %v1541, %v1653
        %1655 = vmatprep.mubr.bf16.mxu0 %v437
        %1656 = vmatmul.mubr.bf16.gmra.mxu0 %v436
        %v1657 = vpop.f32.mrf.mxu0
        %v1658 = vadd.f32 %v1545, %v1657
        %v1659 = vpop.f32.mrf.mxu0
        %v1660 = vadd.f32 %v1547, %v1659
        %v1661 = vpop.f32.mrf.mxu0
        %v1662 = vadd.f32 %v1549, %v1661
        %v1663 = vpop.f32.mrf.mxu0
        %v1664 = vadd.f32 %v1551, %v1663
        %1665 = vmatprep.mubr.bf16.mxu0 %v445
        %1666 = vmatmul.mubr.bf16.gmra.mxu0 %v444
        %v1667 = vpop.f32.mrf.mxu0
        %v1668 = vadd.f32 %v1555, %v1667
        %v1669 = vpop.f32.mrf.mxu0
        %v1670 = vadd.f32 %v1557, %v1669
        %v1671 = vpop.f32.mrf.mxu0
        %v1672 = vadd.f32 %v1559, %v1671
        %v1673 = vpop.f32.mrf.mxu0
        %v1674 = vadd.f32 %v1561, %v1673
        %1675 = vmatprep.mubr.bf16.mxu0 %v453
        %1676 = vmatmul.mubr.bf16.gmra.mxu0 %v452
        %v1677 = vpop.f32.mrf.mxu0
        %v1678 = vadd.f32 %v1565, %v1677
        %v1679 = vpop.f32.mrf.mxu0
        %v1680 = vadd.f32 %v1567, %v1679
        %v1681 = vpop.f32.mrf.mxu0
        %v1682 = vadd.f32 %v1569, %v1681
        %v1683 = vpop.f32.mrf.mxu0
        %v1684 = vadd.f32 %v1571, %v1683
        %1685 = vdwg.mxu0
        %v1686 = vtanh.pop %v1608
        %v1687 = vtanh.pop %v1610
        %v1688 = vtanh.pop %v1612
        %v1689 = vtanh.pop %v1614
        %v1690 = vtanh.pop %v1618
        %v1691 = vtanh.pop %v1620
        %v1692 = vtanh.pop %v1622
        %v1693 = vtanh.pop %v1624
        %v1694 = vtanh.pop %v1628
        %v1695 = vtanh.pop %v1630
        %v1696 = vtanh.pop %v1632
        %v1697 = vtanh.pop %v1634
        %v1698 = vtanh.pop %v1638
        %v1699 = vtanh.pop %v1640
        %v1700 = vtanh.pop %v1642
        %v1701 = vtanh.pop %v1644
        %v1702 = vtanh.pop %v1648
        %v1703 = vtanh.pop %v1650
        %v1704 = vtanh.pop %v1652
        %v1705 = vtanh.pop %v1654
        %v1706 = vtanh.pop %v1658
        %v1707 = vtanh.pop %v1660
        %v1708 = vtanh.pop %v1662
        %v1709 = vtanh.pop %v1664
        %v1710 = vtanh.pop %v1668
        %v1711 = vtanh.pop %v1670
        %v1712 = vtanh.pop %v1672
        %v1713 = vtanh.pop %v1674
        %v1714 = vtanh.pop %v1678
        %v1715 = vtanh.pop %v1680
        %v1716 = vtanh.pop %v1682
        %v1717 = vtanh.pop %v1684
        %v1718 = vld [vmem:[%s3] sm:$0x3]
        %v1719 = vpack.c.bf16 %v1688, %v1686
        %v1720 = vpack.c.bf16 %v1689, %v1687
        %v1721 = vpack.c.bf16 %v1692, %v1690
        %v1722 = vpack.c.bf16 %v1693, %v1691
        %v1723 = vpack.c.bf16 %v1696, %v1694
        %v1724 = vpack.c.bf16 %v1697, %v1695
        %v1725 = vpack.c.bf16 %v1700, %v1698
        %v1726 = vpack.c.bf16 %v1701, %v1699
        %v1727 = vpack.c.bf16 %v1704, %v1702
        %v1728 = vpack.c.bf16 %v1705, %v1703
        %v1729 = vpack.c.bf16 %v1708, %v1706
        %v1730 = vpack.c.bf16 %v1709, %v1707
        %v1731 = vpack.c.bf16 %v1712, %v1710
        %v1732 = vpack.c.bf16 %v1713, %v1711
        %v1733 = vpack.c.bf16 %v1716, %v1714
        %v1734 = vpack.c.bf16 %v1717, %v1715
        %v1735 = vld [vmem:[#allocation2] sm:$0x1]
        %1737 = vset.pattern.permute.xlu0 0
        %1738 = vperm.xlu0 %1737, %v1735
        %v1739 = vpop.permute.xlu0 %1738
        %v1741 = vlaneseq
        %v1742 = vshrl.u32 %v1741, 7
        %v1743 = vsub.s32 0, %v1742
        %v1744 = vrot.slane %v1739, %v1743
        %v1747 = vunpack.c.l.s4 1966171168
        %v1748 = vunpack.c.0.s8 %v1747
        %v1749 = vlaneseq
        %v1750 = vshrl.u32 %v1749, 7
        %v1751 = vsub.s32 %v1748, %v1750
        %v1752 = vrot.slane %v1718, %v1751
        %v1753 = vcombine.high %v1752, %v1752
        %v1755 = vunpack.c.l.s4 1966171168
        %v1756 = vunpack.c.0.s8 %v1755
        %v1757 = vlaneseq
        %v1758 = vshrl.u32 %v1757, 7
        %v1759 = vsub.s32 %v1756, %v1758
        %v1760 = vrot.slane %v1752, %v1759
        %v1762 = vunpack.c.l.s4 1966171168
        %v1763 = vunpack.c.0.s8 %v1762
        %v1764 = vlaneseq
        %v1765 = vshrl.u32 %v1764, 7
        %v1766 = vsub.s32 %v1763, %v1765
        %v1767 = vrot.slane %v1753, %v1766
        %1770 = vmatprep.subr.bf16.mxu0 %v1734
        %1771 = vmatpush1.bf16.xpose.msra.mxu0 %v1733
        %1772 = vmatprep.subr.bf16.mxu0 %v1732
        %1773 = vmatpush1.bf16.xpose.msra.mxu0 %v1731
        %1774 = vmatprep.subr.bf16.mxu0 %v1730
        %1775 = vmatpush1.bf16.xpose.msra.mxu0 %v1729
        %1776 = vmatprep.subr.bf16.mxu0 %v1728
        %1777 = vmatpush1.bf16.xpose.msra.mxu0 %v1727
        %1778 = vmatprep.subr.bf16.mxu0 %v1726
        %1779 = vmatpush1.bf16.xpose.msra.mxu0 %v1725
        %1780 = vmatprep.subr.bf16.mxu0 %v1724
        %1781 = vmatpush1.bf16.xpose.msra.mxu0 %v1723
        %1782 = vmatprep.subr.bf16.mxu0 %v1722
        %1783 = vmatpush1.bf16.xpose.msra.mxu0 %v1721
        %1784 = vmatprep.subr.bf16.mxu0 %v1720
        %1785 = vmatpush1.bf16.xpose.msra.mxu0 %v1719
        %1786 = vmatprep.subr.bf16.mxu0 0
        %1787 = vmatpush2.bf16.xpose.msra.mxu0 0
        %1788 = vmatprep.subr.bf16.mxu0 0
        %1789 = vmatpush2.bf16.xpose.msra.mxu0 0
        %1790 = vmatprep.subr.bf16.mxu0 0
        %1791 = vmatpush2.bf16.xpose.msra.mxu0 0
        %1792 = vmatprep.subr.bf16.mxu0 0
        %1793 = vmatpush2.bf16.xpose.msra.mxu0 0
        %1794 = vmatprep.subr.bf16.mxu0 0
        %1795 = vmatpush2.bf16.xpose.msra.mxu0 0
        %1796 = vmatprep.subr.bf16.mxu0 0
        %1797 = vmatpush2.bf16.xpose.msra.mxu0 0
        %1798 = vmatprep.subr.bf16.mxu0 0
        %1799 = vmatpush2.bf16.xpose.msra.mxu0 0
        %1800 = vmatprep.subr.bf16.mxu0 0
        %1801 = vmatpush2.bf16.xpose.msra.mxu0 0
        %1802 = vmatprep.mubr.bf16.mxu0 %v1767
        %1803 = vmatmul.mubr.bf16.gmra.mxu0 %v1760
        %v1804 = vpop.f32.mrf.mxu0
        %v1805 = vadd.f32 %v1744, %v1804
        %v1806 = vpop.f32.mrf.mxu0
        %v1807 = vpop.f32.mrf.mxu0
        %v1808 = vpop.f32.mrf.mxu0
        %1809 = vdwg.mxu0
        %1810 = vst [vmem:[%s259] sm:$0x1] %v1805
        %s1811 = sand.u32 %s143, 1
        %s1812 = scalar_lea.sflag [#allocation5], %s1811
        %s1813 = sand.u32 %s143, 1
        %s1814 = scalar_lea.vmem [#allocation8], %s1813
        // Predicated region
        $region49: #{tpu_custom_call.1} parent=39 // pred_check
          %p1815 = pneg %p153
        $region50: #{tpu_custom_call.1} parent=39 // pred_check_branch
          %1817 = sbr.rel (%p1815) target = $region52
        $region51: #{tpu_custom_call.1} parent=39 // pred_region
          %s1819 = ssub.s32 16, 16
          %1820 = vsyncadd %s1812, %s1819
          %s1821 = smul.addr %s25, 16
          %s1822 = scalar_lea.hbm %s5, %s1821
          %s1824 = sshll.u32 %s1814, 4
          %s1825 = int_to_ptr.vmem [resolvable:$true] %s1824
          %1827 = dma.vmem_to_hbm [thread:$0]  %s1825, 16, %s1822, %s1812
        $region52: #{tpu_custom_call.1} parent=39 // pred_fallthru
          _
      $region40: #{tpu_custom_call.1} parent=5 // pred_fallthru
        _
      %p1828 = scmp.le.s32.totalorder 2, %s20
      // Predicated region
      $region53: #{tpu_custom_call.1} parent=5 // pred_check
        %p1829 = pneg %p1828
      $region54: #{tpu_custom_call.1} parent=5 // pred_check_branch
        %1831 = sbr.rel (%p1829) target = $region56
      $region55: #{tpu_custom_call.1} parent=5 // pred_region
        %s1832 = ssub.s32 %s20, 2
        // Predicated region
        $region57: #{tpu_custom_call.1} parent=55 // pred_check
          %p1833 = pneg %p159
        $region58: #{tpu_custom_call.1} parent=55 // pred_check_branch
          %1835 = sbr.rel (%p1833) target = $region60
        $region59: #{tpu_custom_call.1} parent=55 // pred_region
          %s1836 = sand.u32 %s144, 1
          %s1837 = scalar_lea.sflag [#allocation5], %s1836
          %s1838 = sand.u32 %s144, 1
          %s1839 = scalar_lea.vmem [#allocation8], %s1838
          %1840 = dma.done %s1837, 16
        $region60: #{tpu_custom_call.1} parent=55 // pred_fallthru
          _
      $region56: #{tpu_custom_call.1} parent=5 // pred_fallthru
        _
    $region6: #{tpu_custom_call.1} parent=1 // loop_footer
      %s24 = sadd.s32 1, %s20
    $region7: #{tpu_custom_call.1} parent=1 // loop_footer_branch
      %19 = sbr.rel target = $region3
    $region8: #{tpu_custom_call.1} parent=1 // loop_exit
      _
    %1841 = vsyncpa [#allocation4], 1
    %s1842 = scalar_lea.sflag [#allocation4], 1
    %1843 = vsyncpa %s1842, 1
    %1844 = vsyncpa [#allocation7], 1
    %1845 = vsyncpa [#allocation5], 1
    %s1846 = scalar_lea.sflag [#allocation5], 1
    %1847 = vsyncpa %s1846, 1

</llo_original>
